<compile_context>
chip_gen: v7x
topology: tpu7x:2x2x1
jax: 0.10.0
libtpu: 0.0.40
codegen_flags: <defaults>
</compile_context>

<pallas_src>
import math

import jax
import jax.numpy as jnp
import numpy as np
from jax.experimental import pallas as pl
from jax.experimental.pallas import tpu as pltpu

# ---- problem sizes (small, consistent with the module) ----
BATCH = 2
SEQ = 8
N_HEAD = 4
N_EMBD = 32
D_HEAD = N_EMBD // N_HEAD
N_TOKENS = BATCH * SEQ


def self_attention_kernel(x_ref, wqkv_ref, wo_ref, o_ref):
    """Single invocation (no grid).

    x_ref    : (B*S, E)    = (16, 32)  VMEM
    wqkv_ref : (E + 1, 3E) = (33, 96)  VMEM; rows 0..E-1 = W_in^T (Q columns
                                       pre-scaled by 1/sqrt(Dh)), row E = bias
    wo_ref   : (E + 1, E)  = (33, 32)  VMEM; rows 0..E-1 = W_out^T, row E = bias
    o_ref    : (B*S, E)    = (16, 32)  VMEM
    """
    x = x_ref[...]                                                   # (16, 32)

    # --- fused q/k/v projection: ONE 96-lane-wide MXU matmul ---------------
    qkv = jnp.dot(x, wqkv_ref[0:N_EMBD, :],
                  preferred_element_type=jnp.float32)
    qkv = qkv + wqkv_ref[N_EMBD:N_EMBD + 1, :]                       # (16, 96)

    # --- gather (B*H, S, Dh) head blocks (static sublane/lane slices) ------
    def heads(col0):
        return jnp.stack(
            [qkv[b * SEQ:(b + 1) * SEQ,
                 col0 + h * D_HEAD: col0 + (h + 1) * D_HEAD]
             for b in range(BATCH) for h in range(N_HEAD)], axis=0)

    q = heads(0)                    # (G, S, Dh) = (8, 8, 8); scale pre-folded
    k = heads(N_EMBD)
    v = heads(2 * N_EMBD)

    # --- attention: one batched score matmul + ONE softmax sequence --------
    s = jnp.einsum("gqd,gkd->gqk", q, k,
                   preferred_element_type=jnp.float32)               # (8, 8, 8)
    s = s - jnp.max(s, axis=-1, keepdims=True)
    p = jnp.exp(s)
    den = jnp.sum(p, axis=-1, keepdims=True)
    r = pl.reciprocal(den, approx=True)          # EUP slot (effectively free)
    r = r * (2.0 - den * r)                      # one Newton step -> ~f32 exact
    p = p * r
    o_heads = jnp.einsum("gqk,gkd->gqd", p, v,
                         preferred_element_type=jnp.float32)          # (8, 8, 8)

    # --- concat heads back to (B*S, E) and do ONE out_proj matmul ----------
    o2d = jnp.concatenate(
        [jnp.concatenate([o_heads[b * N_HEAD + h] for h in range(N_HEAD)],
                         axis=-1)
         for b in range(BATCH)], axis=0)                              # (16, 32)

    out = jnp.dot(o2d, wo_ref[0:N_EMBD, :],
                  preferred_element_type=jnp.float32)
    out = out + wo_ref[N_EMBD:N_EMBD + 1, :]
    o_ref[...] = out.astype(o_ref.dtype)                              # 1 store


def pack_self_attention_params(w_in, b_in, w_out, b_out):
    """One-time ("model init") packing of PyTorch nn.Linear params.

    w_in : (3E, E), b_in : (3E,), w_out : (E, E), b_out : (E,)
    Returns (wqkv_slab (E+1, 3E), wo_slab (E+1, E)); softmax scale is folded
    into the Q columns of wqkv_slab.
    """
    scale = 1.0 / math.sqrt(D_HEAD)
    col_scale = jnp.concatenate(
        [jnp.full((N_EMBD,), scale, dtype=w_in.dtype),
         jnp.ones((2 * N_EMBD,), dtype=w_in.dtype)])
    wqkv = w_in.T * col_scale[None, :]                      # (E, 3E)
    bqkv = b_in * col_scale                                 # (3E,)
    wqkv_slab = jnp.concatenate([wqkv, bqkv[None, :]], axis=0)     # (E+1, 3E)
    wo_slab = jnp.concatenate([w_out.T, b_out[None, :]], axis=0)   # (E+1, E)
    return wqkv_slab, wo_slab


@jax.jit
def self_attention(x, wqkv_slab, wo_slab):
    """x: (B, S, E); slabs from pack_self_attention_params (computed once)."""
    B, S, E = x.shape
    assert (B, S, E) == (BATCH, SEQ, N_EMBD)
    x2 = x.reshape(B * S, E)

    vmem = pl.BlockSpec(memory_space=pltpu.MemorySpace.VMEM)
    out2 = pl.pallas_call(
        self_attention_kernel,
        out_shape=jax.ShapeDtypeStruct((B * S, E), x.dtype),
        in_specs=[vmem, vmem, vmem],
        out_specs=vmem,
    )(x2, wqkv_slab, wo_slab)
    return out2.reshape(B, S, E)


def self_attention_ref(x, w_in, b_in, w_out, b_out):
    """Plain-JAX reference mirroring the PyTorch forward."""
    B, S, E = x.shape
    qkv = jnp.einsum("bse,fe->bsf", x, w_in) + b_in
    q, k, v = jnp.split(qkv, 3, axis=-1)

    def heads(t):  # (B, S, E) -> (B, H, S, Dh)
        return t.reshape(B, S, N_HEAD, D_HEAD).transpose(0, 2, 1, 3)

    q, k, v = heads(q), heads(k), heads(v)
    s = jnp.einsum("bhqd,bhkd->bhqk", q, k) / math.sqrt(D_HEAD)
    p = jax.nn.softmax(s, axis=-1)
    o = jnp.einsum("bhqk,bhkd->bhqd", p, v)
    o = o.transpose(0, 2, 1, 3).reshape(B, S, E)
    return jnp.einsum("bse,fe->bsf", o, w_out) + b_out


if __name__ == "__main__":
    key = jax.random.PRNGKey(0)
    kx, k1, k2, k3, k4 = jax.random.split(key, 5)

    x = jax.random.normal(kx, (BATCH, SEQ, N_EMBD), dtype=jnp.float32)

    # nn.Linear(n_embd, 3*n_embd): weight (3E, E), bias (3E,)
    lim = 1.0 / math.sqrt(N_EMBD)
    w_in = jax.random.uniform(k1, (3 * N_EMBD, N_EMBD), jnp.float32, -lim, lim)
    b_in = jax.random.uniform(k2, (3 * N_EMBD,), jnp.float32, -lim, lim)

    # nn.Linear(n_embd, n_embd): weight (E, E), bias (E,)
    w_out = jax.random.uniform(k3, (N_EMBD, N_EMBD), jnp.float32, -lim, lim)
    b_out = jax.random.uniform(k4, (N_EMBD,), jnp.float32, -lim, lim)

    # One-time weight packing, hoisted out of the per-call wrapper.
    wqkv_slab, wo_slab = pack_self_attention_params(w_in, b_in, w_out, b_out)

    out = self_attention(x, wqkv_slab, wo_slab)
    out = jax.block_until_ready(out)

    ref = self_attention_ref(x, w_in, b_in, w_out, b_out)
    np.testing.assert_allclose(np.asarray(out), np.asarray(ref),
                               atol=1e-5, rtol=1e-5)

    print("KERNEL_OK")
</pallas_src>

<mosaic_0001>
module attributes {stable_mosaic.version = 11 : i64} {
  func.func @self_attention_kernel(%arg0: memref<16x32xf32, #tpu.memory_space<vmem>>, %arg1: memref<33x96xf32, #tpu.memory_space<vmem>>, %arg2: memref<33x32xf32, #tpu.memory_space<vmem>>, %arg3: memref<16x32xf32, #tpu.memory_space<vmem>>) attributes {dimension_semantics = [], scalar_prefetch = 0 : i64, scratch_operands = 0 : i64, tpu.core_type = #tpu.core_type<tc>} {
    %c0 = arith.constant 0 : index
    %c0_0 = arith.constant 0 : index
    %0 = vector.load %arg0[%c0, %c0_0] : memref<16x32xf32, #tpu.memory_space<vmem>>, vector<16x32xf32>
    %c0_1 = arith.constant 0 : index
    %c0_2 = arith.constant 0 : index
    %1 = vector.load %arg1[%c0_1, %c0_2] : memref<33x96xf32, #tpu.memory_space<vmem>>, vector<32x96xf32>
    %cst = arith.constant dense<0.000000e+00> : vector<16x96xf32>
    %2 = tpu.matmul %0, %1, %cst {dimension_numbers = #tpu.dot_dimension_numbers<[1], [0], [0], [1], [0, 0, 1, 1], [], []>} : vector<16x32xf32>, vector<32x96xf32>, vector<16x96xf32> -> vector<16x96xf32>
    %c32 = arith.constant 32 : index
    %c0_3 = arith.constant 0 : index
    %3 = vector.load %arg1[%c32, %c0_3] : memref<33x96xf32, #tpu.memory_space<vmem>>, vector<1x96xf32>
    %4 = vector.broadcast %3 : vector<1x96xf32> to vector<16x96xf32>
    %5 = arith.addf %2, %4 : vector<16x96xf32>
    %6 = vector.extract_strided_slice %5 {offsets = [0, 0], sizes = [8, 8], strides = [1, 1]} : vector<16x96xf32> to vector<8x8xf32>
    %7 = vector.extract_strided_slice %5 {offsets = [0, 8], sizes = [8, 8], strides = [1, 1]} : vector<16x96xf32> to vector<8x8xf32>
    %8 = vector.extract_strided_slice %5 {offsets = [0, 16], sizes = [8, 8], strides = [1, 1]} : vector<16x96xf32> to vector<8x8xf32>
    %9 = vector.extract_strided_slice %5 {offsets = [0, 24], sizes = [8, 8], strides = [1, 1]} : vector<16x96xf32> to vector<8x8xf32>
    %10 = vector.extract_strided_slice %5 {offsets = [8, 0], sizes = [8, 8], strides = [1, 1]} : vector<16x96xf32> to vector<8x8xf32>
    %11 = vector.extract_strided_slice %5 {offsets = [8, 8], sizes = [8, 8], strides = [1, 1]} : vector<16x96xf32> to vector<8x8xf32>
    %12 = vector.extract_strided_slice %5 {offsets = [8, 16], sizes = [8, 8], strides = [1, 1]} : vector<16x96xf32> to vector<8x8xf32>
    %13 = vector.extract_strided_slice %5 {offsets = [8, 24], sizes = [8, 8], strides = [1, 1]} : vector<16x96xf32> to vector<8x8xf32>
    %14 = vector.shape_cast %6 : vector<8x8xf32> to vector<1x8x8xf32>
    %15 = vector.shape_cast %7 : vector<8x8xf32> to vector<1x8x8xf32>
    %16 = vector.shape_cast %8 : vector<8x8xf32> to vector<1x8x8xf32>
    %17 = vector.shape_cast %9 : vector<8x8xf32> to vector<1x8x8xf32>
    %18 = vector.shape_cast %10 : vector<8x8xf32> to vector<1x8x8xf32>
    %19 = vector.shape_cast %11 : vector<8x8xf32> to vector<1x8x8xf32>
    %20 = vector.shape_cast %12 : vector<8x8xf32> to vector<1x8x8xf32>
    %21 = vector.shape_cast %13 : vector<8x8xf32> to vector<1x8x8xf32>
    %22 = tpu.concatenate %14, %15, %16, %17, %18, %19, %20, %21 in 0 : vector<1x8x8xf32>, vector<1x8x8xf32>, vector<1x8x8xf32>, vector<1x8x8xf32>, vector<1x8x8xf32>, vector<1x8x8xf32>, vector<1x8x8xf32>, vector<1x8x8xf32> -> vector<8x8x8xf32>
    %23 = vector.extract_strided_slice %5 {offsets = [0, 32], sizes = [8, 8], strides = [1, 1]} : vector<16x96xf32> to vector<8x8xf32>
    %24 = vector.extract_strided_slice %5 {offsets = [0, 40], sizes = [8, 8], strides = [1, 1]} : vector<16x96xf32> to vector<8x8xf32>
    %25 = vector.extract_strided_slice %5 {offsets = [0, 48], sizes = [8, 8], strides = [1, 1]} : vector<16x96xf32> to vector<8x8xf32>
    %26 = vector.extract_strided_slice %5 {offsets = [0, 56], sizes = [8, 8], strides = [1, 1]} : vector<16x96xf32> to vector<8x8xf32>
    %27 = vector.extract_strided_slice %5 {offsets = [8, 32], sizes = [8, 8], strides = [1, 1]} : vector<16x96xf32> to vector<8x8xf32>
    %28 = vector.extract_strided_slice %5 {offsets = [8, 40], sizes = [8, 8], strides = [1, 1]} : vector<16x96xf32> to vector<8x8xf32>
    %29 = vector.extract_strided_slice %5 {offsets = [8, 48], sizes = [8, 8], strides = [1, 1]} : vector<16x96xf32> to vector<8x8xf32>
    %30 = vector.extract_strided_slice %5 {offsets = [8, 56], sizes = [8, 8], strides = [1, 1]} : vector<16x96xf32> to vector<8x8xf32>
    %31 = vector.shape_cast %23 : vector<8x8xf32> to vector<1x8x8xf32>
    %32 = vector.shape_cast %24 : vector<8x8xf32> to vector<1x8x8xf32>
    %33 = vector.shape_cast %25 : vector<8x8xf32> to vector<1x8x8xf32>
    %34 = vector.shape_cast %26 : vector<8x8xf32> to vector<1x8x8xf32>
    %35 = vector.shape_cast %27 : vector<8x8xf32> to vector<1x8x8xf32>
    %36 = vector.shape_cast %28 : vector<8x8xf32> to vector<1x8x8xf32>
    %37 = vector.shape_cast %29 : vector<8x8xf32> to vector<1x8x8xf32>
    %38 = vector.shape_cast %30 : vector<8x8xf32> to vector<1x8x8xf32>
    %39 = tpu.concatenate %31, %32, %33, %34, %35, %36, %37, %38 in 0 : vector<1x8x8xf32>, vector<1x8x8xf32>, vector<1x8x8xf32>, vector<1x8x8xf32>, vector<1x8x8xf32>, vector<1x8x8xf32>, vector<1x8x8xf32>, vector<1x8x8xf32> -> vector<8x8x8xf32>
    %40 = vector.extract_strided_slice %5 {offsets = [0, 64], sizes = [8, 8], strides = [1, 1]} : vector<16x96xf32> to vector<8x8xf32>
    %41 = vector.extract_strided_slice %5 {offsets = [0, 72], sizes = [8, 8], strides = [1, 1]} : vector<16x96xf32> to vector<8x8xf32>
    %42 = vector.extract_strided_slice %5 {offsets = [0, 80], sizes = [8, 8], strides = [1, 1]} : vector<16x96xf32> to vector<8x8xf32>
    %43 = vector.extract_strided_slice %5 {offsets = [0, 88], sizes = [8, 8], strides = [1, 1]} : vector<16x96xf32> to vector<8x8xf32>
    %44 = vector.extract_strided_slice %5 {offsets = [8, 64], sizes = [8, 8], strides = [1, 1]} : vector<16x96xf32> to vector<8x8xf32>
    %45 = vector.extract_strided_slice %5 {offsets = [8, 72], sizes = [8, 8], strides = [1, 1]} : vector<16x96xf32> to vector<8x8xf32>
    %46 = vector.extract_strided_slice %5 {offsets = [8, 80], sizes = [8, 8], strides = [1, 1]} : vector<16x96xf32> to vector<8x8xf32>
    %47 = vector.extract_strided_slice %5 {offsets = [8, 88], sizes = [8, 8], strides = [1, 1]} : vector<16x96xf32> to vector<8x8xf32>
    %48 = vector.shape_cast %40 : vector<8x8xf32> to vector<1x8x8xf32>
    %49 = vector.shape_cast %41 : vector<8x8xf32> to vector<1x8x8xf32>
    %50 = vector.shape_cast %42 : vector<8x8xf32> to vector<1x8x8xf32>
    %51 = vector.shape_cast %43 : vector<8x8xf32> to vector<1x8x8xf32>
    %52 = vector.shape_cast %44 : vector<8x8xf32> to vector<1x8x8xf32>
    %53 = vector.shape_cast %45 : vector<8x8xf32> to vector<1x8x8xf32>
    %54 = vector.shape_cast %46 : vector<8x8xf32> to vector<1x8x8xf32>
    %55 = vector.shape_cast %47 : vector<8x8xf32> to vector<1x8x8xf32>
    %56 = tpu.concatenate %48, %49, %50, %51, %52, %53, %54, %55 in 0 : vector<1x8x8xf32>, vector<1x8x8xf32>, vector<1x8x8xf32>, vector<1x8x8xf32>, vector<1x8x8xf32>, vector<1x8x8xf32>, vector<1x8x8xf32>, vector<1x8x8xf32> -> vector<8x8x8xf32>
    "tpu.trace_start"() <{level = 10 : i32, message = "gqd,gkd->gqk"}> : () -> ()
    %cst_4 = arith.constant dense<0.000000e+00> : vector<8x8x8xf32>
    %57 = tpu.matmul %22, %39, %cst_4 {dimension_numbers = #tpu.dot_dimension_numbers<[2], [2], [1], [1], [0, 0, 0, 1, 1, 1], [0], [0]>} : vector<8x8x8xf32>, vector<8x8x8xf32>, vector<8x8x8xf32> -> vector<8x8x8xf32>
    "tpu.trace_stop"() : () -> ()
    %cst_5 = arith.constant dense<0xFF800000> : vector<8x8xf32>
    %58 = vector.multi_reduction <maximumf>, %57, %cst_5 [2] : vector<8x8x8xf32> to vector<8x8xf32>
    %59 = vector.shape_cast %58 : vector<8x8xf32> to vector<8x8x1xf32>
    %60 = vector.broadcast %59 : vector<8x8x1xf32> to vector<8x8x8xf32>
    %61 = arith.subf %57, %60 : vector<8x8x8xf32>
    %62 = math.exp %61 : vector<8x8x8xf32>
    %cst_6 = arith.constant dense<0.000000e+00> : vector<8x8xf32>
    %63 = vector.multi_reduction <add>, %62, %cst_6 [2] : vector<8x8x8xf32> to vector<8x8xf32>
    %64 = vector.shape_cast %63 : vector<8x8xf32> to vector<8x8x1xf32>
    %65 = tpu.reciprocal %64 {approx = true} : vector<8x8x1xf32> -> vector<8x8x1xf32>
    %66 = arith.mulf %64, %65 : vector<8x8x1xf32>
    %cst_7 = arith.constant 2.000000e+00 : f32
    %67 = vector.broadcast %cst_7 : f32 to vector<8x8x1xf32>
    %68 = arith.subf %67, %66 : vector<8x8x1xf32>
    %69 = arith.mulf %65, %68 : vector<8x8x1xf32>
    %70 = vector.broadcast %69 : vector<8x8x1xf32> to vector<8x8x8xf32>
    %71 = arith.mulf %62, %70 : vector<8x8x8xf32>
    "tpu.trace_start"() <{level = 10 : i32, message = "gqk,gkd->gqd"}> : () -> ()
    %cst_8 = arith.constant dense<0.000000e+00> : vector<8x8x8xf32>
    %72 = tpu.matmul %71, %56, %cst_8 {dimension_numbers = #tpu.dot_dimension_numbers<[2], [1], [1], [2], [0, 0, 0, 1, 1, 2], [0], [0]>} : vector<8x8x8xf32>, vector<8x8x8xf32>, vector<8x8x8xf32> -> vector<8x8x8xf32>
    "tpu.trace_stop"() : () -> ()
    %73 = vector.extract_strided_slice %72 {offsets = [0, 0, 0], sizes = [1, 8, 8], strides = [1, 1, 1]} : vector<8x8x8xf32> to vector<1x8x8xf32>
    %74 = vector.shape_cast %73 : vector<1x8x8xf32> to vector<8x8xf32>
    %75 = vector.extract_strided_slice %72 {offsets = [1, 0, 0], sizes = [1, 8, 8], strides = [1, 1, 1]} : vector<8x8x8xf32> to vector<1x8x8xf32>
    %76 = vector.shape_cast %75 : vector<1x8x8xf32> to vector<8x8xf32>
    %77 = vector.extract_strided_slice %72 {offsets = [2, 0, 0], sizes = [1, 8, 8], strides = [1, 1, 1]} : vector<8x8x8xf32> to vector<1x8x8xf32>
    %78 = vector.shape_cast %77 : vector<1x8x8xf32> to vector<8x8xf32>
    %79 = vector.extract_strided_slice %72 {offsets = [3, 0, 0], sizes = [1, 8, 8], strides = [1, 1, 1]} : vector<8x8x8xf32> to vector<1x8x8xf32>
    %80 = vector.shape_cast %79 : vector<1x8x8xf32> to vector<8x8xf32>
    %81 = tpu.concatenate %74, %76, %78, %80 in 1 : vector<8x8xf32>, vector<8x8xf32>, vector<8x8xf32>, vector<8x8xf32> -> vector<8x32xf32>
    %82 = vector.extract_strided_slice %72 {offsets = [4, 0, 0], sizes = [1, 8, 8], strides = [1, 1, 1]} : vector<8x8x8xf32> to vector<1x8x8xf32>
    %83 = vector.shape_cast %82 : vector<1x8x8xf32> to vector<8x8xf32>
    %84 = vector.extract_strided_slice %72 {offsets = [5, 0, 0], sizes = [1, 8, 8], strides = [1, 1, 1]} : vector<8x8x8xf32> to vector<1x8x8xf32>
    %85 = vector.shape_cast %84 : vector<1x8x8xf32> to vector<8x8xf32>
    %86 = vector.extract_strided_slice %72 {offsets = [6, 0, 0], sizes = [1, 8, 8], strides = [1, 1, 1]} : vector<8x8x8xf32> to vector<1x8x8xf32>
    %87 = vector.shape_cast %86 : vector<1x8x8xf32> to vector<8x8xf32>
    %88 = vector.extract_strided_slice %72 {offsets = [7, 0, 0], sizes = [1, 8, 8], strides = [1, 1, 1]} : vector<8x8x8xf32> to vector<1x8x8xf32>
    %89 = vector.shape_cast %88 : vector<1x8x8xf32> to vector<8x8xf32>
    %90 = tpu.concatenate %83, %85, %87, %89 in 1 : vector<8x8xf32>, vector<8x8xf32>, vector<8x8xf32>, vector<8x8xf32> -> vector<8x32xf32>
    %91 = tpu.concatenate %81, %90 in 0 : vector<8x32xf32>, vector<8x32xf32> -> vector<16x32xf32>
    %c0_9 = arith.constant 0 : index
    %c0_10 = arith.constant 0 : index
    %92 = vector.load %arg2[%c0_9, %c0_10] : memref<33x32xf32, #tpu.memory_space<vmem>>, vector<32x32xf32>
    %cst_11 = arith.constant dense<0.000000e+00> : vector<16x32xf32>
    %93 = tpu.matmul %91, %92, %cst_11 {dimension_numbers = #tpu.dot_dimension_numbers<[1], [0], [0], [1], [0, 0, 1, 1], [], []>} : vector<16x32xf32>, vector<32x32xf32>, vector<16x32xf32> -> vector<16x32xf32>
    %c32_12 = arith.constant 32 : index
    %c0_13 = arith.constant 0 : index
    %94 = vector.load %arg2[%c32_12, %c0_13] : memref<33x32xf32, #tpu.memory_space<vmem>>, vector<1x32xf32>
    %95 = vector.broadcast %94 : vector<1x32xf32> to vector<16x32xf32>
    %96 = arith.addf %93, %95 : vector<16x32xf32>
    %c0_14 = arith.constant 0 : index
    %c0_15 = arith.constant 0 : index
    %97 = vector.load %arg3[%c0_14, %c0_15] : memref<16x32xf32, #tpu.memory_space<vmem>>, vector<16x32xf32>
    tpu.vector_store %arg3[%c0_14, %c0_15], %96 {strides = array<i32>} : memref<16x32xf32, #tpu.memory_space<vmem>>, vector<16x32xf32>,
    return
  }
}

</mosaic_0001>

<llo_original>
// kernel: self_attention.1
$region0: #{self_attention.1}
  #allocation0 [shape = 'u32[]', space=smem, size = 0x4, offset = 0x4, fixed_abs, tag = 'smem constant byte address 0x4 - core index']
  #allocation1 [shape = 'u32[144,128]{1,0:T(1,128)}', space=vmem, size = 0x12000, scoped, tag = 'internal scratch']
  %s0 = inlined_call_operand.vmem [shape: f32[16,32], index: 0, kind: input, shape index: {}]
  %s1 = inlined_call_operand.vmem [shape: f32[33,96], index: 1, kind: input, shape index: {}]
  %s2 = inlined_call_operand.vmem [shape: f32[33,32], index: 2, kind: input, shape index: {}]
  %s3 = inlined_call_operand.hbm [shape: f32[16,32], index: 3, kind: output, shape index: {}]
  %s4 = sld [smem:[#allocation0]]
  $region22: #{self_attention.1} parent=0
    _
  %s6 = ssub.s32 1, %s4
  %s7 = scalar_select 0, %s6, %s4
  $region1: #{self_attention.1} parent=0
    #allocation2 [shape = 'u8[8192]{0}', space=vmem, size = 0x2000, scoped, tag = 'output window, operand 0, single buffered']
    #allocation3 [shape = 's32[1]{0}', space=sflag, size = 0x4, scoped, tag = 'scoped memory for self_attention.1']
    %8 = vsyncpa [#allocation3], 0
    // Predicated region
    $region2: #{self_attention.1} parent=1 // pred_check
      _
    $region3: #{self_attention.1} parent=1 // pred_check_branch
      %10 = sbr.rel (0) target = $region5
    $region4: #{self_attention.1} parent=1 // pred_region
      _
    $region5: #{self_attention.1} parent=1 // pred_fallthru
      _
    // Predicated region
    $region6: #{self_attention.1} parent=1 // pred_check
      _
    $region7: #{self_attention.1} parent=1 // pred_check_branch
      %12 = sbr.rel (0) target = $region9
    $region8: #{self_attention.1} parent=1 // pred_region
      _
    $region9: #{self_attention.1} parent=1 // pred_fallthru
      _
    // Predicated region
    $region10: #{self_attention.1} parent=1 // pred_check
      _
    $region11: #{self_attention.1} parent=1 // pred_check_branch
      %14 = sbr.rel (0) target = $region13
    $region12: #{self_attention.1} parent=1 // pred_region
      _
    $region13: #{self_attention.1} parent=1 // pred_fallthru
      _
    %v15 = vld [vmem:[%s0] sm:$0xff]
    %v16 = vld [vmem:[%s0 + $0x8] sm:$0xff]
    %v17 = vld [vmem:[%s1] sm:$0xff]
    %v18 = vld [vmem:[%s1 + $0x8] sm:$0xff]
    %v19 = vld [vmem:[%s1 + $0x10] sm:$0xff]
    %v20 = vld [vmem:[%s1 + $0x18] sm:$0xff]
    %v21 = vld [vmem:[%s1 + $0x20] sm:$0x1]
    %v22 = vlaneseq
    %v23 = vshrl.u32 %v22, 7
    %v24 = vsub.s32 0, %v23
    %v25 = vrot.slane %v21, %v24
    %vm26 = vcmask 261120
    %v28 = vsel %vm26, %v15, 0
    %v31 = vsel %vm26, %v16, 0
    %33 = vmatprep.subr.mxu0 0.0
    %34 = vmatpush1.msra.mxu0 %v17
    %35 = vmatprep.subr.mxu0 0.0
    %36 = vmatpush1.msra.mxu0 %v18
    %37 = vmatprep.subr.mxu0 0.0
    %38 = vmatpush1.msra.mxu0 %v19
    %39 = vmatprep.subr.mxu0 0.0
    %40 = vmatpush1.msra.mxu0 %v20
    %41 = vmatprep.subr.mxu0 0.0
    %42 = vmatpush1.msra.mxu0 0.0
    %43 = vmatprep.subr.mxu0 0.0
    %44 = vmatpush1.msra.mxu0 0.0
    %45 = vmatprep.subr.mxu0 0.0
    %46 = vmatpush1.msra.mxu0 0.0
    %47 = vmatprep.subr.mxu0 0.0
    %48 = vmatpush1.msra.mxu0 0.0
    %49 = vmatprep.subr.mxu0 0.0
    %50 = vmatpush1.msra.mxu0 0.0
    %51 = vmatprep.subr.mxu0 0.0
    %52 = vmatpush1.msra.mxu0 0.0
    %53 = vmatprep.subr.mxu0 0.0
    %54 = vmatpush1.msra.mxu0 0.0
    %55 = vmatprep.subr.mxu0 0.0
    %56 = vmatpush1.msra.mxu0 0.0
    %57 = vmatprep.subr.mxu0 0.0
    %58 = vmatpush1.msra.mxu0 0.0
    %59 = vmatprep.subr.mxu0 0.0
    %60 = vmatpush1.msra.mxu0 0.0
    %61 = vmatprep.subr.mxu0 0.0
    %62 = vmatpush1.msra.mxu0 0.0
    %63 = vmatprep.subr.mxu0 0.0
    %64 = vmatpush1.msra.mxu0 0.0
    %65 = vmatprep.subr.mxu0 0.0
    %66 = vmatpush1.msra.mxu0 0.0
    %67 = vmatprep.subr.mxu0 0.0
    %68 = vmatpush1.msra.mxu0 0.0
    %69 = vmatprep.subr.mxu0 0.0
    %70 = vmatpush1.msra.mxu0 0.0
    %71 = vmatprep.subr.mxu0 0.0
    %72 = vmatpush1.msra.mxu0 0.0
    %73 = vmatprep.subr.mxu0 0.0
    %74 = vmatpush1.msra.mxu0 0.0
    %75 = vmatprep.subr.mxu0 0.0
    %76 = vmatpush1.msra.mxu0 0.0
    %77 = vmatprep.subr.mxu0 0.0
    %78 = vmatpush1.msra.mxu0 0.0
    %79 = vmatprep.subr.mxu0 0.0
    %80 = vmatpush1.msra.mxu0 0.0
    %81 = vmatprep.subr.mxu0 0.0
    %82 = vmatpush1.msra.mxu0 0.0
    %83 = vmatprep.subr.mxu0 0.0
    %84 = vmatpush1.msra.mxu0 0.0
    %85 = vmatprep.subr.mxu0 0.0
    %86 = vmatpush1.msra.mxu0 0.0
    %87 = vmatprep.subr.mxu0 0.0
    %88 = vmatpush1.msra.mxu0 0.0
    %89 = vmatprep.subr.mxu0 0.0
    %90 = vmatpush1.msra.mxu0 0.0
    %91 = vmatprep.subr.mxu0 0.0
    %92 = vmatpush1.msra.mxu0 0.0
    %93 = vmatprep.subr.mxu0 0.0
    %94 = vmatpush1.msra.mxu0 0.0
    %95 = vmatprep.subr.mxu0 0.0
    %96 = vmatpush1.msra.mxu0 0.0
    %97 = vmatprep.mubr.f32.mxu0 0.0
    %98 = vmatmul.mubr.f32.gmra.mrb[0].mxu0 %v28
    %v99 = vpop.f32.mrb[0].mxu0
    %v100 = vadd.f32 %v25, %v99
    %v101 = vpop.f32.mrb[0].mxu0
    %102 = vmatprep.mubr.f32.mxu0 0.0
    %103 = vmatmul.mubr.f32.gmra.mrb[0].mxu0 %v31
    %v104 = vpop.f32.mrb[0].mxu0
    %v105 = vadd.f32 %v25, %v104
    %v106 = vpop.f32.mrb[0].mxu0
    %107 = vdwg.mxu0
    %109 = vrot.lane.b32.xlu0 %v100, 120
    %v110 = vpop.permute.xlu0 %109
    %111 = vrot.lane.b32.xlu0 %v100, 112
    %v112 = vpop.permute.xlu0 %111
    %113 = vrot.lane.b32.xlu0 %v100, 104
    %v114 = vpop.permute.xlu0 %113
    %116 = vrot.lane.b32.xlu0 %v105, 120
    %v117 = vpop.permute.xlu0 %116
    %118 = vrot.lane.b32.xlu0 %v105, 112
    %v119 = vpop.permute.xlu0 %118
    %120 = vrot.lane.b32.xlu0 %v105, 104
    %v121 = vpop.permute.xlu0 %120
    %122 = vrot.lane.b32.xlu0 %v100, 96
    %v123 = vpop.permute.xlu0 %122
    %vm124 = vcmask 64512
    %v125 = vsel %vm124, %v100, 0
    %v127 = vsel %vm124, %v123, 0
    %129 = vmatprep.subr.mxu0 0.0
    %130 = vmatpush1.xpose.msra.mxu0 %v127
    %131 = vmatprep.subr.mxu0 0.0
    %132 = vmatpush1.xpose.msra.mxu0 0.0
    %133 = vmatprep.subr.mxu0 0.0
    %134 = vmatpush1.xpose.msra.mxu0 0.0
    %135 = vmatprep.subr.mxu0 0.0
    %136 = vmatpush1.xpose.msra.mxu0 0.0
    %137 = vmatprep.subr.mxu0 0.0
    %138 = vmatpush1.xpose.msra.mxu0 0.0
    %139 = vmatprep.subr.mxu0 0.0
    %140 = vmatpush1.xpose.msra.mxu0 0.0
    %141 = vmatprep.subr.mxu0 0.0
    %142 = vmatpush1.xpose.msra.mxu0 0.0
    %143 = vmatprep.subr.mxu0 0.0
    %144 = vmatpush1.xpose.msra.mxu0 0.0
    %145 = vmatprep.subr.mxu0 0.0
    %146 = vmatpush1.xpose.msra.mxu0 0.0
    %147 = vmatprep.subr.mxu0 0.0
    %148 = vmatpush1.xpose.msra.mxu0 0.0
    %149 = vmatprep.subr.mxu0 0.0
    %150 = vmatpush1.xpose.msra.mxu0 0.0
    %151 = vmatprep.subr.mxu0 0.0
    %152 = vmatpush1.xpose.msra.mxu0 0.0
    %153 = vmatprep.subr.mxu0 0.0
    %154 = vmatpush1.xpose.msra.mxu0 0.0
    %155 = vmatprep.subr.mxu0 0.0
    %156 = vmatpush1.xpose.msra.mxu0 0.0
    %157 = vmatprep.subr.mxu0 0.0
    %158 = vmatpush1.xpose.msra.mxu0 0.0
    %159 = vmatprep.subr.mxu0 0.0
    %160 = vmatpush1.xpose.msra.mxu0 0.0
    %161 = vmatprep.subr.mxu0 0.0
    %162 = vmatpush1.xpose.msra.mxu0 0.0
    %163 = vmatprep.subr.mxu0 0.0
    %164 = vmatpush1.xpose.msra.mxu0 0.0
    %165 = vmatprep.subr.mxu0 0.0
    %166 = vmatpush1.xpose.msra.mxu0 0.0
    %167 = vmatprep.subr.mxu0 0.0
    %168 = vmatpush1.xpose.msra.mxu0 0.0
    %169 = vmatprep.subr.mxu0 0.0
    %170 = vmatpush1.xpose.msra.mxu0 0.0
    %171 = vmatprep.subr.mxu0 0.0
    %172 = vmatpush1.xpose.msra.mxu0 0.0
    %173 = vmatprep.subr.mxu0 0.0
    %174 = vmatpush1.xpose.msra.mxu0 0.0
    %175 = vmatprep.subr.mxu0 0.0
    %176 = vmatpush1.xpose.msra.mxu0 0.0
    %177 = vmatprep.subr.mxu0 0.0
    %178 = vmatpush1.xpose.msra.mxu0 0.0
    %179 = vmatprep.subr.mxu0 0.0
    %180 = vmatpush1.xpose.msra.mxu0 0.0
    %181 = vmatprep.subr.mxu0 0.0
    %182 = vmatpush1.xpose.msra.mxu0 0.0
    %183 = vmatprep.subr.mxu0 0.0
    %184 = vmatpush1.xpose.msra.mxu0 0.0
    %185 = vmatprep.subr.mxu0 0.0
    %186 = vmatpush1.xpose.msra.mxu0 0.0
    %187 = vmatprep.subr.mxu0 0.0
    %188 = vmatpush1.xpose.msra.mxu0 0.0
    %189 = vmatprep.subr.mxu0 0.0
    %190 = vmatpush1.xpose.msra.mxu0 0.0
    %191 = vmatprep.subr.mxu0 0.0
    %192 = vmatpush1.xpose.msra.mxu0 0.0
    %193 = vmatprep.mubr.f32.mxu0 0.0
    %194 = vmatmul.mubr.f32.gmra.mrb[0].mxu0 %v125
    %v195 = vpop.f32.mrb[0].mxu0
    %v196 = vadd.f32 0.0, %v195
    %v197 = vpop.f32.mrb[0].mxu0
    %198 = vdwg.mxu0
    %199 = vrot.lane.b32.xlu0 %v110, 96
    %v200 = vpop.permute.xlu0 %199
    %v201 = vsel %vm124, %v110, 0
    %v203 = vsel %vm124, %v200, 0
    %205 = vmatprep.subr.mxu0 0.0
    %206 = vmatpush1.xpose.msra.mxu0 %v203
    %207 = vmatprep.subr.mxu0 0.0
    %208 = vmatpush1.xpose.msra.mxu0 0.0
    %209 = vmatprep.subr.mxu0 0.0
    %210 = vmatpush1.xpose.msra.mxu0 0.0
    %211 = vmatprep.subr.mxu0 0.0
    %212 = vmatpush1.xpose.msra.mxu0 0.0
    %213 = vmatprep.subr.mxu0 0.0
    %214 = vmatpush1.xpose.msra.mxu0 0.0
    %215 = vmatprep.subr.mxu0 0.0
    %216 = vmatpush1.xpose.msra.mxu0 0.0
    %217 = vmatprep.subr.mxu0 0.0
    %218 = vmatpush1.xpose.msra.mxu0 0.0
    %219 = vmatprep.subr.mxu0 0.0
    %220 = vmatpush1.xpose.msra.mxu0 0.0
    %221 = vmatprep.subr.mxu0 0.0
    %222 = vmatpush1.xpose.msra.mxu0 0.0
    %223 = vmatprep.subr.mxu0 0.0
    %224 = vmatpush1.xpose.msra.mxu0 0.0
    %225 = vmatprep.subr.mxu0 0.0
    %226 = vmatpush1.xpose.msra.mxu0 0.0
    %227 = vmatprep.subr.mxu0 0.0
    %228 = vmatpush1.xpose.msra.mxu0 0.0
    %229 = vmatprep.subr.mxu0 0.0
    %230 = vmatpush1.xpose.msra.mxu0 0.0
    %231 = vmatprep.subr.mxu0 0.0
    %232 = vmatpush1.xpose.msra.mxu0 0.0
    %233 = vmatprep.subr.mxu0 0.0
    %234 = vmatpush1.xpose.msra.mxu0 0.0
    %235 = vmatprep.subr.mxu0 0.0
    %236 = vmatpush1.xpose.msra.mxu0 0.0
    %237 = vmatprep.subr.mxu0 0.0
    %238 = vmatpush1.xpose.msra.mxu0 0.0
    %239 = vmatprep.subr.mxu0 0.0
    %240 = vmatpush1.xpose.msra.mxu0 0.0
    %241 = vmatprep.subr.mxu0 0.0
    %242 = vmatpush1.xpose.msra.mxu0 0.0
    %243 = vmatprep.subr.mxu0 0.0
    %244 = vmatpush1.xpose.msra.mxu0 0.0
    %245 = vmatprep.subr.mxu0 0.0
    %246 = vmatpush1.xpose.msra.mxu0 0.0
    %247 = vmatprep.subr.mxu0 0.0
    %248 = vmatpush1.xpose.msra.mxu0 0.0
    %249 = vmatprep.subr.mxu0 0.0
    %250 = vmatpush1.xpose.msra.mxu0 0.0
    %251 = vmatprep.subr.mxu0 0.0
    %252 = vmatpush1.xpose.msra.mxu0 0.0
    %253 = vmatprep.subr.mxu0 0.0
    %254 = vmatpush1.xpose.msra.mxu0 0.0
    %255 = vmatprep.subr.mxu0 0.0
    %256 = vmatpush1.xpose.msra.mxu0 0.0
    %257 = vmatprep.subr.mxu0 0.0
    %258 = vmatpush1.xpose.msra.mxu0 0.0
    %259 = vmatprep.subr.mxu0 0.0
    %260 = vmatpush1.xpose.msra.mxu0 0.0
    %261 = vmatprep.subr.mxu0 0.0
    %262 = vmatpush1.xpose.msra.mxu0 0.0
    %263 = vmatprep.subr.mxu0 0.0
    %264 = vmatpush1.xpose.msra.mxu0 0.0
    %265 = vmatprep.subr.mxu0 0.0
    %266 = vmatpush1.xpose.msra.mxu0 0.0
    %267 = vmatprep.subr.mxu0 0.0
    %268 = vmatpush1.xpose.msra.mxu0 0.0
    %269 = vmatprep.mubr.f32.mxu0 0.0
    %270 = vmatmul.mubr.f32.gmra.mrb[0].mxu0 %v201
    %v271 = vpop.f32.mrb[0].mxu0
    %v272 = vadd.f32 0.0, %v271
    %v273 = vpop.f32.mrb[0].mxu0
    %274 = vdwg.mxu0
    %275 = vrot.lane.b32.xlu0 %v112, 96
    %v276 = vpop.permute.xlu0 %275
    %v277 = vsel %vm124, %v112, 0
    %v279 = vsel %vm124, %v276, 0
    %281 = vmatprep.subr.mxu0 0.0
    %282 = vmatpush1.xpose.msra.mxu0 %v279
    %283 = vmatprep.subr.mxu0 0.0
    %284 = vmatpush1.xpose.msra.mxu0 0.0
    %285 = vmatprep.subr.mxu0 0.0
    %286 = vmatpush1.xpose.msra.mxu0 0.0
    %287 = vmatprep.subr.mxu0 0.0
    %288 = vmatpush1.xpose.msra.mxu0 0.0
    %289 = vmatprep.subr.mxu0 0.0
    %290 = vmatpush1.xpose.msra.mxu0 0.0
    %291 = vmatprep.subr.mxu0 0.0
    %292 = vmatpush1.xpose.msra.mxu0 0.0
    %293 = vmatprep.subr.mxu0 0.0
    %294 = vmatpush1.xpose.msra.mxu0 0.0
    %295 = vmatprep.subr.mxu0 0.0
    %296 = vmatpush1.xpose.msra.mxu0 0.0
    %297 = vmatprep.subr.mxu0 0.0
    %298 = vmatpush1.xpose.msra.mxu0 0.0
    %299 = vmatprep.subr.mxu0 0.0
    %300 = vmatpush1.xpose.msra.mxu0 0.0
    %301 = vmatprep.subr.mxu0 0.0
    %302 = vmatpush1.xpose.msra.mxu0 0.0
    %303 = vmatprep.subr.mxu0 0.0
    %304 = vmatpush1.xpose.msra.mxu0 0.0
    %305 = vmatprep.subr.mxu0 0.0
    %306 = vmatpush1.xpose.msra.mxu0 0.0
    %307 = vmatprep.subr.mxu0 0.0
    %308 = vmatpush1.xpose.msra.mxu0 0.0
    %309 = vmatprep.subr.mxu0 0.0
    %310 = vmatpush1.xpose.msra.mxu0 0.0
    %311 = vmatprep.subr.mxu0 0.0
    %312 = vmatpush1.xpose.msra.mxu0 0.0
    %313 = vmatprep.subr.mxu0 0.0
    %314 = vmatpush1.xpose.msra.mxu0 0.0
    %315 = vmatprep.subr.mxu0 0.0
    %316 = vmatpush1.xpose.msra.mxu0 0.0
    %317 = vmatprep.subr.mxu0 0.0
    %318 = vmatpush1.xpose.msra.mxu0 0.0
    %319 = vmatprep.subr.mxu0 0.0
    %320 = vmatpush1.xpose.msra.mxu0 0.0
    %321 = vmatprep.subr.mxu0 0.0
    %322 = vmatpush1.xpose.msra.mxu0 0.0
    %323 = vmatprep.subr.mxu0 0.0
    %324 = vmatpush1.xpose.msra.mxu0 0.0
    %325 = vmatprep.subr.mxu0 0.0
    %326 = vmatpush1.xpose.msra.mxu0 0.0
    %327 = vmatprep.subr.mxu0 0.0
    %328 = vmatpush1.xpose.msra.mxu0 0.0
    %329 = vmatprep.subr.mxu0 0.0
    %330 = vmatpush1.xpose.msra.mxu0 0.0
    %331 = vmatprep.subr.mxu0 0.0
    %332 = vmatpush1.xpose.msra.mxu0 0.0
    %333 = vmatprep.subr.mxu0 0.0
    %334 = vmatpush1.xpose.msra.mxu0 0.0
    %335 = vmatprep.subr.mxu0 0.0
    %336 = vmatpush1.xpose.msra.mxu0 0.0
    %337 = vmatprep.subr.mxu0 0.0
    %338 = vmatpush1.xpose.msra.mxu0 0.0
    %339 = vmatprep.subr.mxu0 0.0
    %340 = vmatpush1.xpose.msra.mxu0 0.0
    %341 = vmatprep.subr.mxu0 0.0
    %342 = vmatpush1.xpose.msra.mxu0 0.0
    %343 = vmatprep.subr.mxu0 0.0
    %344 = vmatpush1.xpose.msra.mxu0 0.0
    %345 = vmatprep.mubr.f32.mxu0 0.0
    %346 = vmatmul.mubr.f32.gmra.mrb[0].mxu0 %v277
    %v347 = vpop.f32.mrb[0].mxu0
    %v348 = vadd.f32 0.0, %v347
    %v349 = vpop.f32.mrb[0].mxu0
    %350 = vdwg.mxu0
    %351 = vrot.lane.b32.xlu0 %v114, 96
    %v352 = vpop.permute.xlu0 %351
    %v353 = vsel %vm124, %v114, 0
    %v355 = vsel %vm124, %v352, 0
    %357 = vmatprep.subr.mxu0 0.0
    %358 = vmatpush1.xpose.msra.mxu0 %v355
    %359 = vmatprep.subr.mxu0 0.0
    %360 = vmatpush1.xpose.msra.mxu0 0.0
    %361 = vmatprep.subr.mxu0 0.0
    %362 = vmatpush1.xpose.msra.mxu0 0.0
    %363 = vmatprep.subr.mxu0 0.0
    %364 = vmatpush1.xpose.msra.mxu0 0.0
    %365 = vmatprep.subr.mxu0 0.0
    %366 = vmatpush1.xpose.msra.mxu0 0.0
    %367 = vmatprep.subr.mxu0 0.0
    %368 = vmatpush1.xpose.msra.mxu0 0.0
    %369 = vmatprep.subr.mxu0 0.0
    %370 = vmatpush1.xpose.msra.mxu0 0.0
    %371 = vmatprep.subr.mxu0 0.0
    %372 = vmatpush1.xpose.msra.mxu0 0.0
    %373 = vmatprep.subr.mxu0 0.0
    %374 = vmatpush1.xpose.msra.mxu0 0.0
    %375 = vmatprep.subr.mxu0 0.0
    %376 = vmatpush1.xpose.msra.mxu0 0.0
    %377 = vmatprep.subr.mxu0 0.0
    %378 = vmatpush1.xpose.msra.mxu0 0.0
    %379 = vmatprep.subr.mxu0 0.0
    %380 = vmatpush1.xpose.msra.mxu0 0.0
    %381 = vmatprep.subr.mxu0 0.0
    %382 = vmatpush1.xpose.msra.mxu0 0.0
    %383 = vmatprep.subr.mxu0 0.0
    %384 = vmatpush1.xpose.msra.mxu0 0.0
    %385 = vmatprep.subr.mxu0 0.0
    %386 = vmatpush1.xpose.msra.mxu0 0.0
    %387 = vmatprep.subr.mxu0 0.0
    %388 = vmatpush1.xpose.msra.mxu0 0.0
    %389 = vmatprep.subr.mxu0 0.0
    %390 = vmatpush1.xpose.msra.mxu0 0.0
    %391 = vmatprep.subr.mxu0 0.0
    %392 = vmatpush1.xpose.msra.mxu0 0.0
    %393 = vmatprep.subr.mxu0 0.0
    %394 = vmatpush1.xpose.msra.mxu0 0.0
    %395 = vmatprep.subr.mxu0 0.0
    %396 = vmatpush1.xpose.msra.mxu0 0.0
    %397 = vmatprep.subr.mxu0 0.0
    %398 = vmatpush1.xpose.msra.mxu0 0.0
    %399 = vmatprep.subr.mxu0 0.0
    %400 = vmatpush1.xpose.msra.mxu0 0.0
    %401 = vmatprep.subr.mxu0 0.0
    %402 = vmatpush1.xpose.msra.mxu0 0.0
    %403 = vmatprep.subr.mxu0 0.0
    %404 = vmatpush1.xpose.msra.mxu0 0.0
    %405 = vmatprep.subr.mxu0 0.0
    %406 = vmatpush1.xpose.msra.mxu0 0.0
    %407 = vmatprep.subr.mxu0 0.0
    %408 = vmatpush1.xpose.msra.mxu0 0.0
    %409 = vmatprep.subr.mxu0 0.0
    %410 = vmatpush1.xpose.msra.mxu0 0.0
    %411 = vmatprep.subr.mxu0 0.0
    %412 = vmatpush1.xpose.msra.mxu0 0.0
    %413 = vmatprep.subr.mxu0 0.0
    %414 = vmatpush1.xpose.msra.mxu0 0.0
    %415 = vmatprep.subr.mxu0 0.0
    %416 = vmatpush1.xpose.msra.mxu0 0.0
    %417 = vmatprep.subr.mxu0 0.0
    %418 = vmatpush1.xpose.msra.mxu0 0.0
    %419 = vmatprep.subr.mxu0 0.0
    %420 = vmatpush1.xpose.msra.mxu0 0.0
    %421 = vmatprep.mubr.f32.mxu0 0.0
    %422 = vmatmul.mubr.f32.gmra.mrb[0].mxu0 %v353
    %v423 = vpop.f32.mrb[0].mxu0
    %v424 = vadd.f32 0.0, %v423
    %v425 = vpop.f32.mrb[0].mxu0
    %426 = vdwg.mxu0
    %427 = vrot.lane.b32.xlu0 %v105, 96
    %v428 = vpop.permute.xlu0 %427
    %v429 = vsel %vm124, %v105, 0
    %v431 = vsel %vm124, %v428, 0
    %433 = vmatprep.subr.mxu0 0.0
    %434 = vmatpush1.xpose.msra.mxu0 %v431
    %435 = vmatprep.subr.mxu0 0.0
    %436 = vmatpush1.xpose.msra.mxu0 0.0
    %437 = vmatprep.subr.mxu0 0.0
    %438 = vmatpush1.xpose.msra.mxu0 0.0
    %439 = vmatprep.subr.mxu0 0.0
    %440 = vmatpush1.xpose.msra.mxu0 0.0
    %441 = vmatprep.subr.mxu0 0.0
    %442 = vmatpush1.xpose.msra.mxu0 0.0
    %443 = vmatprep.subr.mxu0 0.0
    %444 = vmatpush1.xpose.msra.mxu0 0.0
    %445 = vmatprep.subr.mxu0 0.0
    %446 = vmatpush1.xpose.msra.mxu0 0.0
    %447 = vmatprep.subr.mxu0 0.0
    %448 = vmatpush1.xpose.msra.mxu0 0.0
    %449 = vmatprep.subr.mxu0 0.0
    %450 = vmatpush1.xpose.msra.mxu0 0.0
    %451 = vmatprep.subr.mxu0 0.0
    %452 = vmatpush1.xpose.msra.mxu0 0.0
    %453 = vmatprep.subr.mxu0 0.0
    %454 = vmatpush1.xpose.msra.mxu0 0.0
    %455 = vmatprep.subr.mxu0 0.0
    %456 = vmatpush1.xpose.msra.mxu0 0.0
    %457 = vmatprep.subr.mxu0 0.0
    %458 = vmatpush1.xpose.msra.mxu0 0.0
    %459 = vmatprep.subr.mxu0 0.0
    %460 = vmatpush1.xpose.msra.mxu0 0.0
    %461 = vmatprep.subr.mxu0 0.0
    %462 = vmatpush1.xpose.msra.mxu0 0.0
    %463 = vmatprep.subr.mxu0 0.0
    %464 = vmatpush1.xpose.msra.mxu0 0.0
    %465 = vmatprep.subr.mxu0 0.0
    %466 = vmatpush1.xpose.msra.mxu0 0.0
    %467 = vmatprep.subr.mxu0 0.0
    %468 = vmatpush1.xpose.msra.mxu0 0.0
    %469 = vmatprep.subr.mxu0 0.0
    %470 = vmatpush1.xpose.msra.mxu0 0.0
    %471 = vmatprep.subr.mxu0 0.0
    %472 = vmatpush1.xpose.msra.mxu0 0.0
    %473 = vmatprep.subr.mxu0 0.0
    %474 = vmatpush1.xpose.msra.mxu0 0.0
    %475 = vmatprep.subr.mxu0 0.0
    %476 = vmatpush1.xpose.msra.mxu0 0.0
    %477 = vmatprep.subr.mxu0 0.0
    %478 = vmatpush1.xpose.msra.mxu0 0.0
    %479 = vmatprep.subr.mxu0 0.0
    %480 = vmatpush1.xpose.msra.mxu0 0.0
    %481 = vmatprep.subr.mxu0 0.0
    %482 = vmatpush1.xpose.msra.mxu0 0.0
    %483 = vmatprep.subr.mxu0 0.0
    %484 = vmatpush1.xpose.msra.mxu0 0.0
    %485 = vmatprep.subr.mxu0 0.0
    %486 = vmatpush1.xpose.msra.mxu0 0.0
    %487 = vmatprep.subr.mxu0 0.0
    %488 = vmatpush1.xpose.msra.mxu0 0.0
    %489 = vmatprep.subr.mxu0 0.0
    %490 = vmatpush1.xpose.msra.mxu0 0.0
    %491 = vmatprep.subr.mxu0 0.0
    %492 = vmatpush1.xpose.msra.mxu0 0.0
    %493 = vmatprep.subr.mxu0 0.0
    %494 = vmatpush1.xpose.msra.mxu0 0.0
    %495 = vmatprep.subr.mxu0 0.0
    %496 = vmatpush1.xpose.msra.mxu0 0.0
    %497 = vmatprep.mubr.f32.mxu0 0.0
    %498 = vmatmul.mubr.f32.gmra.mrb[0].mxu0 %v429
    %v499 = vpop.f32.mrb[0].mxu0
    %v500 = vadd.f32 0.0, %v499
    %v501 = vpop.f32.mrb[0].mxu0
    %502 = vdwg.mxu0
    %503 = vrot.lane.b32.xlu0 %v117, 96
    %v504 = vpop.permute.xlu0 %503
    %v505 = vsel %vm124, %v117, 0
    %v507 = vsel %vm124, %v504, 0
    %509 = vmatprep.subr.mxu0 0.0
    %510 = vmatpush1.xpose.msra.mxu0 %v507
    %511 = vmatprep.subr.mxu0 0.0
    %512 = vmatpush1.xpose.msra.mxu0 0.0
    %513 = vmatprep.subr.mxu0 0.0
    %514 = vmatpush1.xpose.msra.mxu0 0.0
    %515 = vmatprep.subr.mxu0 0.0
    %516 = vmatpush1.xpose.msra.mxu0 0.0
    %517 = vmatprep.subr.mxu0 0.0
    %518 = vmatpush1.xpose.msra.mxu0 0.0
    %519 = vmatprep.subr.mxu0 0.0
    %520 = vmatpush1.xpose.msra.mxu0 0.0
    %521 = vmatprep.subr.mxu0 0.0
    %522 = vmatpush1.xpose.msra.mxu0 0.0
    %523 = vmatprep.subr.mxu0 0.0
    %524 = vmatpush1.xpose.msra.mxu0 0.0
    %525 = vmatprep.subr.mxu0 0.0
    %526 = vmatpush1.xpose.msra.mxu0 0.0
    %527 = vmatprep.subr.mxu0 0.0
    %528 = vmatpush1.xpose.msra.mxu0 0.0
    %529 = vmatprep.subr.mxu0 0.0
    %530 = vmatpush1.xpose.msra.mxu0 0.0
    %531 = vmatprep.subr.mxu0 0.0
    %532 = vmatpush1.xpose.msra.mxu0 0.0
    %533 = vmatprep.subr.mxu0 0.0
    %534 = vmatpush1.xpose.msra.mxu0 0.0
    %535 = vmatprep.subr.mxu0 0.0
    %536 = vmatpush1.xpose.msra.mxu0 0.0
    %537 = vmatprep.subr.mxu0 0.0
    %538 = vmatpush1.xpose.msra.mxu0 0.0
    %539 = vmatprep.subr.mxu0 0.0
    %540 = vmatpush1.xpose.msra.mxu0 0.0
    %541 = vmatprep.subr.mxu0 0.0
    %542 = vmatpush1.xpose.msra.mxu0 0.0
    %543 = vmatprep.subr.mxu0 0.0
    %544 = vmatpush1.xpose.msra.mxu0 0.0
    %545 = vmatprep.subr.mxu0 0.0
    %546 = vmatpush1.xpose.msra.mxu0 0.0
    %547 = vmatprep.subr.mxu0 0.0
    %548 = vmatpush1.xpose.msra.mxu0 0.0
    %549 = vmatprep.subr.mxu0 0.0
    %550 = vmatpush1.xpose.msra.mxu0 0.0
    %551 = vmatprep.subr.mxu0 0.0
    %552 = vmatpush1.xpose.msra.mxu0 0.0
    %553 = vmatprep.subr.mxu0 0.0
    %554 = vmatpush1.xpose.msra.mxu0 0.0
    %555 = vmatprep.subr.mxu0 0.0
    %556 = vmatpush1.xpose.msra.mxu0 0.0
    %557 = vmatprep.subr.mxu0 0.0
    %558 = vmatpush1.xpose.msra.mxu0 0.0
    %559 = vmatprep.subr.mxu0 0.0
    %560 = vmatpush1.xpose.msra.mxu0 0.0
    %561 = vmatprep.subr.mxu0 0.0
    %562 = vmatpush1.xpose.msra.mxu0 0.0
    %563 = vmatprep.subr.mxu0 0.0
    %564 = vmatpush1.xpose.msra.mxu0 0.0
    %565 = vmatprep.subr.mxu0 0.0
    %566 = vmatpush1.xpose.msra.mxu0 0.0
    %567 = vmatprep.subr.mxu0 0.0
    %568 = vmatpush1.xpose.msra.mxu0 0.0
    %569 = vmatprep.subr.mxu0 0.0
    %570 = vmatpush1.xpose.msra.mxu0 0.0
    %571 = vmatprep.subr.mxu0 0.0
    %572 = vmatpush1.xpose.msra.mxu0 0.0
    %573 = vmatprep.mubr.f32.mxu0 0.0
    %574 = vmatmul.mubr.f32.gmra.mrb[0].mxu0 %v505
    %v575 = vpop.f32.mrb[0].mxu0
    %v576 = vadd.f32 0.0, %v575
    %v577 = vpop.f32.mrb[0].mxu0
    %578 = vdwg.mxu0
    %579 = vrot.lane.b32.xlu0 %v119, 96
    %v580 = vpop.permute.xlu0 %579
    %v581 = vsel %vm124, %v119, 0
    %v583 = vsel %vm124, %v580, 0
    %585 = vmatprep.subr.mxu0 0.0
    %586 = vmatpush1.xpose.msra.mxu0 %v583
    %587 = vmatprep.subr.mxu0 0.0
    %588 = vmatpush1.xpose.msra.mxu0 0.0
    %589 = vmatprep.subr.mxu0 0.0
    %590 = vmatpush1.xpose.msra.mxu0 0.0
    %591 = vmatprep.subr.mxu0 0.0
    %592 = vmatpush1.xpose.msra.mxu0 0.0
    %593 = vmatprep.subr.mxu0 0.0
    %594 = vmatpush1.xpose.msra.mxu0 0.0
    %595 = vmatprep.subr.mxu0 0.0
    %596 = vmatpush1.xpose.msra.mxu0 0.0
    %597 = vmatprep.subr.mxu0 0.0
    %598 = vmatpush1.xpose.msra.mxu0 0.0
    %599 = vmatprep.subr.mxu0 0.0
    %600 = vmatpush1.xpose.msra.mxu0 0.0
    %601 = vmatprep.subr.mxu0 0.0
    %602 = vmatpush1.xpose.msra.mxu0 0.0
    %603 = vmatprep.subr.mxu0 0.0
    %604 = vmatpush1.xpose.msra.mxu0 0.0
    %605 = vmatprep.subr.mxu0 0.0
    %606 = vmatpush1.xpose.msra.mxu0 0.0
    %607 = vmatprep.subr.mxu0 0.0
    %608 = vmatpush1.xpose.msra.mxu0 0.0
    %609 = vmatprep.subr.mxu0 0.0
    %610 = vmatpush1.xpose.msra.mxu0 0.0
    %611 = vmatprep.subr.mxu0 0.0
    %612 = vmatpush1.xpose.msra.mxu0 0.0
    %613 = vmatprep.subr.mxu0 0.0
    %614 = vmatpush1.xpose.msra.mxu0 0.0
    %615 = vmatprep.subr.mxu0 0.0
    %616 = vmatpush1.xpose.msra.mxu0 0.0
    %617 = vmatprep.subr.mxu0 0.0
    %618 = vmatpush1.xpose.msra.mxu0 0.0
    %619 = vmatprep.subr.mxu0 0.0
    %620 = vmatpush1.xpose.msra.mxu0 0.0
    %621 = vmatprep.subr.mxu0 0.0
    %622 = vmatpush1.xpose.msra.mxu0 0.0
    %623 = vmatprep.subr.mxu0 0.0
    %624 = vmatpush1.xpose.msra.mxu0 0.0
    %625 = vmatprep.subr.mxu0 0.0
    %626 = vmatpush1.xpose.msra.mxu0 0.0
    %627 = vmatprep.subr.mxu0 0.0
    %628 = vmatpush1.xpose.msra.mxu0 0.0
    %629 = vmatprep.subr.mxu0 0.0
    %630 = vmatpush1.xpose.msra.mxu0 0.0
    %631 = vmatprep.subr.mxu0 0.0
    %632 = vmatpush1.xpose.msra.mxu0 0.0
    %633 = vmatprep.subr.mxu0 0.0
    %634 = vmatpush1.xpose.msra.mxu0 0.0
    %635 = vmatprep.subr.mxu0 0.0
    %636 = vmatpush1.xpose.msra.mxu0 0.0
    %637 = vmatprep.subr.mxu0 0.0
    %638 = vmatpush1.xpose.msra.mxu0 0.0
    %639 = vmatprep.subr.mxu0 0.0
    %640 = vmatpush1.xpose.msra.mxu0 0.0
    %641 = vmatprep.subr.mxu0 0.0
    %642 = vmatpush1.xpose.msra.mxu0 0.0
    %643 = vmatprep.subr.mxu0 0.0
    %644 = vmatpush1.xpose.msra.mxu0 0.0
    %645 = vmatprep.subr.mxu0 0.0
    %646 = vmatpush1.xpose.msra.mxu0 0.0
    %647 = vmatprep.subr.mxu0 0.0
    %648 = vmatpush1.xpose.msra.mxu0 0.0
    %649 = vmatprep.mubr.f32.mxu0 0.0
    %650 = vmatmul.mubr.f32.gmra.mrb[0].mxu0 %v581
    %v651 = vpop.f32.mrb[0].mxu0
    %v652 = vadd.f32 0.0, %v651
    %v653 = vpop.f32.mrb[0].mxu0
    %654 = vdwg.mxu0
    %655 = vrot.lane.b32.xlu0 %v121, 96
    %v656 = vpop.permute.xlu0 %655
    %v657 = vsel %vm124, %v121, 0
    %v659 = vsel %vm124, %v656, 0
    %661 = vmatprep.subr.mxu0 0.0
    %662 = vmatpush1.xpose.msra.mxu0 %v659
    %663 = vmatprep.subr.mxu0 0.0
    %664 = vmatpush1.xpose.msra.mxu0 0.0
    %665 = vmatprep.subr.mxu0 0.0
    %666 = vmatpush1.xpose.msra.mxu0 0.0
    %667 = vmatprep.subr.mxu0 0.0
    %668 = vmatpush1.xpose.msra.mxu0 0.0
    %669 = vmatprep.subr.mxu0 0.0
    %670 = vmatpush1.xpose.msra.mxu0 0.0
    %671 = vmatprep.subr.mxu0 0.0
    %672 = vmatpush1.xpose.msra.mxu0 0.0
    %673 = vmatprep.subr.mxu0 0.0
    %674 = vmatpush1.xpose.msra.mxu0 0.0
    %675 = vmatprep.subr.mxu0 0.0
    %676 = vmatpush1.xpose.msra.mxu0 0.0
    %677 = vmatprep.subr.mxu0 0.0
    %678 = vmatpush1.xpose.msra.mxu0 0.0
    %679 = vmatprep.subr.mxu0 0.0
    %680 = vmatpush1.xpose.msra.mxu0 0.0
    %681 = vmatprep.subr.mxu0 0.0
    %682 = vmatpush1.xpose.msra.mxu0 0.0
    %683 = vmatprep.subr.mxu0 0.0
    %684 = vmatpush1.xpose.msra.mxu0 0.0
    %685 = vmatprep.subr.mxu0 0.0
    %686 = vmatpush1.xpose.msra.mxu0 0.0
    %687 = vmatprep.subr.mxu0 0.0
    %688 = vmatpush1.xpose.msra.mxu0 0.0
    %689 = vmatprep.subr.mxu0 0.0
    %690 = vmatpush1.xpose.msra.mxu0 0.0
    %691 = vmatprep.subr.mxu0 0.0
    %692 = vmatpush1.xpose.msra.mxu0 0.0
    %693 = vmatprep.subr.mxu0 0.0
    %694 = vmatpush1.xpose.msra.mxu0 0.0
    %695 = vmatprep.subr.mxu0 0.0
    %696 = vmatpush1.xpose.msra.mxu0 0.0
    %697 = vmatprep.subr.mxu0 0.0
    %698 = vmatpush1.xpose.msra.mxu0 0.0
    %699 = vmatprep.subr.mxu0 0.0
    %700 = vmatpush1.xpose.msra.mxu0 0.0
    %701 = vmatprep.subr.mxu0 0.0
    %702 = vmatpush1.xpose.msra.mxu0 0.0
    %703 = vmatprep.subr.mxu0 0.0
    %704 = vmatpush1.xpose.msra.mxu0 0.0
    %705 = vmatprep.subr.mxu0 0.0
    %706 = vmatpush1.xpose.msra.mxu0 0.0
    %707 = vmatprep.subr.mxu0 0.0
    %708 = vmatpush1.xpose.msra.mxu0 0.0
    %709 = vmatprep.subr.mxu0 0.0
    %710 = vmatpush1.xpose.msra.mxu0 0.0
    %711 = vmatprep.subr.mxu0 0.0
    %712 = vmatpush1.xpose.msra.mxu0 0.0
    %713 = vmatprep.subr.mxu0 0.0
    %714 = vmatpush1.xpose.msra.mxu0 0.0
    %715 = vmatprep.subr.mxu0 0.0
    %716 = vmatpush1.xpose.msra.mxu0 0.0
    %717 = vmatprep.subr.mxu0 0.0
    %718 = vmatpush1.xpose.msra.mxu0 0.0
    %719 = vmatprep.subr.mxu0 0.0
    %720 = vmatpush1.xpose.msra.mxu0 0.0
    %721 = vmatprep.subr.mxu0 0.0
    %722 = vmatpush1.xpose.msra.mxu0 0.0
    %723 = vmatprep.subr.mxu0 0.0
    %724 = vmatpush1.xpose.msra.mxu0 0.0
    %725 = vmatprep.mubr.f32.mxu0 0.0
    %726 = vmatmul.mubr.f32.gmra.mrb[0].mxu0 %v657
    %v727 = vpop.f32.mrb[0].mxu0
    %v728 = vadd.f32 0.0, %v727
    %v729 = vpop.f32.mrb[0].mxu0
    %730 = vdwg.mxu0
    %v731 = vsel %vm124, %v196, -inf
    %732 = vmax.xlane.f32.xlu0 %v731
    %v733 = vpop.xlane.xlu0 %732
    %v734 = vsel %vm124, %v272, -inf
    %735 = vmax.xlane.f32.xlu0 %v734
    %v736 = vpop.xlane.xlu0 %735
    %v737 = vsel %vm124, %v348, -inf
    %738 = vmax.xlane.f32.xlu0 %v737
    %v739 = vpop.xlane.xlu0 %738
    %v740 = vsel %vm124, %v424, -inf
    %741 = vmax.xlane.f32.xlu0 %v740
    %v742 = vpop.xlane.xlu0 %741
    %v743 = vsel %vm124, %v500, -inf
    %744 = vmax.xlane.f32.xlu0 %v743
    %v745 = vpop.xlane.xlu0 %744
    %v746 = vsel %vm124, %v576, -inf
    %747 = vmax.xlane.f32.xlu0 %v746
    %v748 = vpop.xlane.xlu0 %747
    %v749 = vsel %vm124, %v652, -inf
    %750 = vmax.xlane.f32.xlu0 %v749
    %v751 = vpop.xlane.xlu0 %750
    %v752 = vsel %vm124, %v728, -inf
    %753 = vmax.xlane.f32.xlu0 %v752
    %v754 = vpop.xlane.xlu0 %753
    %v755 = vsub.f32 %v196, %v733
    %v756 = vsub.f32 %v272, %v736
    %v757 = vsub.f32 %v348, %v739
    %v758 = vsub.f32 %v424, %v742
    %v759 = vsub.f32 %v500, %v745
    %v760 = vsub.f32 %v576, %v748
    %v761 = vsub.f32 %v652, %v751
    %v762 = vsub.f32 %v728, %v754
    %v763 = vmul.f32 %v755, 1.442695
    %v764 = vpow.pop %v763
    %v765 = vmul.f32 %v756, 1.442695
    %v766 = vpow.pop %v765
    %v767 = vmul.f32 %v757, 1.442695
    %v768 = vpow.pop %v767
    %v769 = vmul.f32 %v758, 1.442695
    %v770 = vpow.pop %v769
    %v771 = vmul.f32 %v759, 1.442695
    %v772 = vpow.pop %v771
    %v773 = vmul.f32 %v760, 1.442695
    %v774 = vpow.pop %v773
    %v775 = vmul.f32 %v761, 1.442695
    %v776 = vpow.pop %v775
    %v777 = vmul.f32 %v762, 1.442695
    %v778 = vpow.pop %v777
    %v779 = vsel %vm124, %v764, 0.0
    %780 = vadd.xlane.f32.xlu0 %v779
    %v781 = vpop.xlane.xlu0 %780
    %v782 = vsel %vm124, %v766, 0.0
    %783 = vadd.xlane.f32.xlu0 %v782
    %v784 = vpop.xlane.xlu0 %783
    %v785 = vsel %vm124, %v768, 0.0
    %786 = vadd.xlane.f32.xlu0 %v785
    %v787 = vpop.xlane.xlu0 %786
    %v788 = vsel %vm124, %v770, 0.0
    %789 = vadd.xlane.f32.xlu0 %v788
    %v790 = vpop.xlane.xlu0 %789
    %v791 = vsel %vm124, %v772, 0.0
    %792 = vadd.xlane.f32.xlu0 %v791
    %v793 = vpop.xlane.xlu0 %792
    %v794 = vsel %vm124, %v774, 0.0
    %795 = vadd.xlane.f32.xlu0 %v794
    %v796 = vpop.xlane.xlu0 %795
    %v797 = vsel %vm124, %v776, 0.0
    %798 = vadd.xlane.f32.xlu0 %v797
    %v799 = vpop.xlane.xlu0 %798
    %v800 = vsel %vm124, %v778, 0.0
    %801 = vadd.xlane.f32.xlu0 %v800
    %v802 = vpop.xlane.xlu0 %801
    %v803 = vrcp.pop %v781
    %v804 = vrcp.pop %v784
    %v805 = vrcp.pop %v787
    %v806 = vrcp.pop %v790
    %v807 = vrcp.pop %v793
    %v808 = vrcp.pop %v796
    %v809 = vrcp.pop %v799
    %v810 = vrcp.pop %v802
    %v811 = vmul.f32 %v781, %v803
    %v812 = vmul.f32 %v784, %v804
    %v813 = vmul.f32 %v787, %v805
    %v814 = vmul.f32 %v790, %v806
    %v815 = vmul.f32 %v793, %v807
    %v816 = vmul.f32 %v796, %v808
    %v817 = vmul.f32 %v799, %v809
    %v818 = vmul.f32 %v802, %v810
    %v819 = vsub.f32 2.0, %v811
    %v820 = vsub.f32 2.0, %v812
    %v821 = vsub.f32 2.0, %v813
    %v822 = vsub.f32 2.0, %v814
    %v823 = vsub.f32 2.0, %v815
    %v824 = vsub.f32 2.0, %v816
    %v825 = vsub.f32 2.0, %v817
    %v826 = vsub.f32 2.0, %v818
    %v827 = vmul.f32 %v803, %v819
    %v828 = vmul.f32 %v804, %v820
    %v829 = vmul.f32 %v805, %v821
    %v830 = vmul.f32 %v806, %v822
    %v831 = vmul.f32 %v807, %v823
    %v832 = vmul.f32 %v808, %v824
    %v833 = vmul.f32 %v809, %v825
    %v834 = vmul.f32 %v810, %v826
    %v835 = vmul.f32 %v764, %v827
    %v836 = vmul.f32 %v766, %v828
    %v837 = vmul.f32 %v768, %v829
    %v838 = vmul.f32 %v770, %v830
    %v839 = vmul.f32 %v772, %v831
    %v840 = vmul.f32 %v774, %v832
    %v841 = vmul.f32 %v776, %v833
    %v842 = vmul.f32 %v778, %v834
    %843 = vrot.lane.b32.xlu0 %v100, 64
    %v844 = vpop.permute.xlu0 %843
    %v847 = vsel %vm124, %v835, 0
    %849 = vmatprep.subr.mxu0 0.0
    %850 = vmatpush1.msra.mxu0 %v844
    %851 = vmatprep.subr.mxu0 0.0
    %852 = vmatpush1.msra.mxu0 0.0
    %853 = vmatprep.subr.mxu0 0.0
    %854 = vmatpush1.msra.mxu0 0.0
    %855 = vmatprep.subr.mxu0 0.0
    %856 = vmatpush1.msra.mxu0 0.0
    %857 = vmatprep.subr.mxu0 0.0
    %858 = vmatpush1.msra.mxu0 0.0
    %859 = vmatprep.subr.mxu0 0.0
    %860 = vmatpush1.msra.mxu0 0.0
    %861 = vmatprep.subr.mxu0 0.0
    %862 = vmatpush1.msra.mxu0 0.0
    %863 = vmatprep.subr.mxu0 0.0
    %864 = vmatpush1.msra.mxu0 0.0
    %865 = vmatprep.subr.mxu0 0.0
    %866 = vmatpush1.msra.mxu0 0.0
    %867 = vmatprep.subr.mxu0 0.0
    %868 = vmatpush1.msra.mxu0 0.0
    %869 = vmatprep.subr.mxu0 0.0
    %870 = vmatpush1.msra.mxu0 0.0
    %871 = vmatprep.subr.mxu0 0.0
    %872 = vmatpush1.msra.mxu0 0.0
    %873 = vmatprep.subr.mxu0 0.0
    %874 = vmatpush1.msra.mxu0 0.0
    %875 = vmatprep.subr.mxu0 0.0
    %876 = vmatpush1.msra.mxu0 0.0
    %877 = vmatprep.subr.mxu0 0.0
    %878 = vmatpush1.msra.mxu0 0.0
    %879 = vmatprep.subr.mxu0 0.0
    %880 = vmatpush1.msra.mxu0 0.0
    %881 = vmatprep.subr.mxu0 0.0
    %882 = vmatpush1.msra.mxu0 0.0
    %883 = vmatprep.subr.mxu0 0.0
    %884 = vmatpush1.msra.mxu0 0.0
    %885 = vmatprep.subr.mxu0 0.0
    %886 = vmatpush1.msra.mxu0 0.0
    %887 = vmatprep.subr.mxu0 0.0
    %888 = vmatpush1.msra.mxu0 0.0
    %889 = vmatprep.subr.mxu0 0.0
    %890 = vmatpush1.msra.mxu0 0.0
    %891 = vmatprep.subr.mxu0 0.0
    %892 = vmatpush1.msra.mxu0 0.0
    %893 = vmatprep.subr.mxu0 0.0
    %894 = vmatpush1.msra.mxu0 0.0
    %895 = vmatprep.subr.mxu0 0.0
    %896 = vmatpush1.msra.mxu0 0.0
    %897 = vmatprep.subr.mxu0 0.0
    %898 = vmatpush1.msra.mxu0 0.0
    %899 = vmatprep.subr.mxu0 0.0
    %900 = vmatpush1.msra.mxu0 0.0
    %901 = vmatprep.subr.mxu0 0.0
    %902 = vmatpush1.msra.mxu0 0.0
    %903 = vmatprep.subr.mxu0 0.0
    %904 = vmatpush1.msra.mxu0 0.0
    %905 = vmatprep.subr.mxu0 0.0
    %906 = vmatpush1.msra.mxu0 0.0
    %907 = vmatprep.subr.mxu0 0.0
    %908 = vmatpush1.msra.mxu0 0.0
    %909 = vmatprep.subr.mxu0 0.0
    %910 = vmatpush1.msra.mxu0 0.0
    %911 = vmatprep.subr.mxu0 0.0
    %912 = vmatpush1.msra.mxu0 0.0
    %913 = vmatprep.mubr.f32.mxu0 0.0
    %914 = vmatmul.mubr.f32.gmra.mrb[0].mxu0 %v847
    %v915 = vpop.f32.mrb[0].mxu0
    %v916 = vadd.f32 0.0, %v915
    %v917 = vpop.f32.mrb[0].mxu0
    %918 = vdwg.mxu0
    %919 = vrot.lane.b32.xlu0 %v110, 64
    %v920 = vpop.permute.xlu0 %919
    %v923 = vsel %vm124, %v836, 0
    %925 = vmatprep.subr.mxu0 0.0
    %926 = vmatpush1.msra.mxu0 %v920
    %927 = vmatprep.subr.mxu0 0.0
    %928 = vmatpush1.msra.mxu0 0.0
    %929 = vmatprep.subr.mxu0 0.0
    %930 = vmatpush1.msra.mxu0 0.0
    %931 = vmatprep.subr.mxu0 0.0
    %932 = vmatpush1.msra.mxu0 0.0
    %933 = vmatprep.subr.mxu0 0.0
    %934 = vmatpush1.msra.mxu0 0.0
    %935 = vmatprep.subr.mxu0 0.0
    %936 = vmatpush1.msra.mxu0 0.0
    %937 = vmatprep.subr.mxu0 0.0
    %938 = vmatpush1.msra.mxu0 0.0
    %939 = vmatprep.subr.mxu0 0.0
    %940 = vmatpush1.msra.mxu0 0.0
    %941 = vmatprep.subr.mxu0 0.0
    %942 = vmatpush1.msra.mxu0 0.0
    %943 = vmatprep.subr.mxu0 0.0
    %944 = vmatpush1.msra.mxu0 0.0
    %945 = vmatprep.subr.mxu0 0.0
    %946 = vmatpush1.msra.mxu0 0.0
    %947 = vmatprep.subr.mxu0 0.0
    %948 = vmatpush1.msra.mxu0 0.0
    %949 = vmatprep.subr.mxu0 0.0
    %950 = vmatpush1.msra.mxu0 0.0
    %951 = vmatprep.subr.mxu0 0.0
    %952 = vmatpush1.msra.mxu0 0.0
    %953 = vmatprep.subr.mxu0 0.0
    %954 = vmatpush1.msra.mxu0 0.0
    %955 = vmatprep.subr.mxu0 0.0
    %956 = vmatpush1.msra.mxu0 0.0
    %957 = vmatprep.subr.mxu0 0.0
    %958 = vmatpush1.msra.mxu0 0.0
    %959 = vmatprep.subr.mxu0 0.0
    %960 = vmatpush1.msra.mxu0 0.0
    %961 = vmatprep.subr.mxu0 0.0
    %962 = vmatpush1.msra.mxu0 0.0
    %963 = vmatprep.subr.mxu0 0.0
    %964 = vmatpush1.msra.mxu0 0.0
    %965 = vmatprep.subr.mxu0 0.0
    %966 = vmatpush1.msra.mxu0 0.0
    %967 = vmatprep.subr.mxu0 0.0
    %968 = vmatpush1.msra.mxu0 0.0
    %969 = vmatprep.subr.mxu0 0.0
    %970 = vmatpush1.msra.mxu0 0.0
    %971 = vmatprep.subr.mxu0 0.0
    %972 = vmatpush1.msra.mxu0 0.0
    %973 = vmatprep.subr.mxu0 0.0
    %974 = vmatpush1.msra.mxu0 0.0
    %975 = vmatprep.subr.mxu0 0.0
    %976 = vmatpush1.msra.mxu0 0.0
    %977 = vmatprep.subr.mxu0 0.0
    %978 = vmatpush1.msra.mxu0 0.0
    %979 = vmatprep.subr.mxu0 0.0
    %980 = vmatpush1.msra.mxu0 0.0
    %981 = vmatprep.subr.mxu0 0.0
    %982 = vmatpush1.msra.mxu0 0.0
    %983 = vmatprep.subr.mxu0 0.0
    %984 = vmatpush1.msra.mxu0 0.0
    %985 = vmatprep.subr.mxu0 0.0
    %986 = vmatpush1.msra.mxu0 0.0
    %987 = vmatprep.subr.mxu0 0.0
    %988 = vmatpush1.msra.mxu0 0.0
    %989 = vmatprep.mubr.f32.mxu0 0.0
    %990 = vmatmul.mubr.f32.gmra.mrb[0].mxu0 %v923
    %v991 = vpop.f32.mrb[0].mxu0
    %v992 = vadd.f32 0.0, %v991
    %v993 = vpop.f32.mrb[0].mxu0
    %994 = vdwg.mxu0
    %995 = vrot.lane.b32.xlu0 %v112, 64
    %v996 = vpop.permute.xlu0 %995
    %v999 = vsel %vm124, %v837, 0
    %1001 = vmatprep.subr.mxu0 0.0
    %1002 = vmatpush1.msra.mxu0 %v996
    %1003 = vmatprep.subr.mxu0 0.0
    %1004 = vmatpush1.msra.mxu0 0.0
    %1005 = vmatprep.subr.mxu0 0.0
    %1006 = vmatpush1.msra.mxu0 0.0
    %1007 = vmatprep.subr.mxu0 0.0
    %1008 = vmatpush1.msra.mxu0 0.0
    %1009 = vmatprep.subr.mxu0 0.0
    %1010 = vmatpush1.msra.mxu0 0.0
    %1011 = vmatprep.subr.mxu0 0.0
    %1012 = vmatpush1.msra.mxu0 0.0
    %1013 = vmatprep.subr.mxu0 0.0
    %1014 = vmatpush1.msra.mxu0 0.0
    %1015 = vmatprep.subr.mxu0 0.0
    %1016 = vmatpush1.msra.mxu0 0.0
    %1017 = vmatprep.subr.mxu0 0.0
    %1018 = vmatpush1.msra.mxu0 0.0
    %1019 = vmatprep.subr.mxu0 0.0
    %1020 = vmatpush1.msra.mxu0 0.0
    %1021 = vmatprep.subr.mxu0 0.0
    %1022 = vmatpush1.msra.mxu0 0.0
    %1023 = vmatprep.subr.mxu0 0.0
    %1024 = vmatpush1.msra.mxu0 0.0
    %1025 = vmatprep.subr.mxu0 0.0
    %1026 = vmatpush1.msra.mxu0 0.0
    %1027 = vmatprep.subr.mxu0 0.0
    %1028 = vmatpush1.msra.mxu0 0.0
    %1029 = vmatprep.subr.mxu0 0.0
    %1030 = vmatpush1.msra.mxu0 0.0
    %1031 = vmatprep.subr.mxu0 0.0
    %1032 = vmatpush1.msra.mxu0 0.0
    %1033 = vmatprep.subr.mxu0 0.0
    %1034 = vmatpush1.msra.mxu0 0.0
    %1035 = vmatprep.subr.mxu0 0.0
    %1036 = vmatpush1.msra.mxu0 0.0
    %1037 = vmatprep.subr.mxu0 0.0
    %1038 = vmatpush1.msra.mxu0 0.0
    %1039 = vmatprep.subr.mxu0 0.0
    %1040 = vmatpush1.msra.mxu0 0.0
    %1041 = vmatprep.subr.mxu0 0.0
    %1042 = vmatpush1.msra.mxu0 0.0
    %1043 = vmatprep.subr.mxu0 0.0
    %1044 = vmatpush1.msra.mxu0 0.0
    %1045 = vmatprep.subr.mxu0 0.0
    %1046 = vmatpush1.msra.mxu0 0.0
    %1047 = vmatprep.subr.mxu0 0.0
    %1048 = vmatpush1.msra.mxu0 0.0
    %1049 = vmatprep.subr.mxu0 0.0
    %1050 = vmatpush1.msra.mxu0 0.0
    %1051 = vmatprep.subr.mxu0 0.0
    %1052 = vmatpush1.msra.mxu0 0.0
    %1053 = vmatprep.subr.mxu0 0.0
    %1054 = vmatpush1.msra.mxu0 0.0
    %1055 = vmatprep.subr.mxu0 0.0
    %1056 = vmatpush1.msra.mxu0 0.0
    %1057 = vmatprep.subr.mxu0 0.0
    %1058 = vmatpush1.msra.mxu0 0.0
    %1059 = vmatprep.subr.mxu0 0.0
    %1060 = vmatpush1.msra.mxu0 0.0
    %1061 = vmatprep.subr.mxu0 0.0
    %1062 = vmatpush1.msra.mxu0 0.0
    %1063 = vmatprep.subr.mxu0 0.0
    %1064 = vmatpush1.msra.mxu0 0.0
    %1065 = vmatprep.mubr.f32.mxu0 0.0
    %1066 = vmatmul.mubr.f32.gmra.mrb[0].mxu0 %v999
    %v1067 = vpop.f32.mrb[0].mxu0
    %v1068 = vadd.f32 0.0, %v1067
    %v1069 = vpop.f32.mrb[0].mxu0
    %1070 = vdwg.mxu0
    %1071 = vrot.lane.b32.xlu0 %v114, 64
    %v1072 = vpop.permute.xlu0 %1071
    %v1075 = vsel %vm124, %v838, 0
    %1077 = vmatprep.subr.mxu0 0.0
    %1078 = vmatpush1.msra.mxu0 %v1072
    %1079 = vmatprep.subr.mxu0 0.0
    %1080 = vmatpush1.msra.mxu0 0.0
    %1081 = vmatprep.subr.mxu0 0.0
    %1082 = vmatpush1.msra.mxu0 0.0
    %1083 = vmatprep.subr.mxu0 0.0
    %1084 = vmatpush1.msra.mxu0 0.0
    %1085 = vmatprep.subr.mxu0 0.0
    %1086 = vmatpush1.msra.mxu0 0.0
    %1087 = vmatprep.subr.mxu0 0.0
    %1088 = vmatpush1.msra.mxu0 0.0
    %1089 = vmatprep.subr.mxu0 0.0
    %1090 = vmatpush1.msra.mxu0 0.0
    %1091 = vmatprep.subr.mxu0 0.0
    %1092 = vmatpush1.msra.mxu0 0.0
    %1093 = vmatprep.subr.mxu0 0.0
    %1094 = vmatpush1.msra.mxu0 0.0
    %1095 = vmatprep.subr.mxu0 0.0
    %1096 = vmatpush1.msra.mxu0 0.0
    %1097 = vmatprep.subr.mxu0 0.0
    %1098 = vmatpush1.msra.mxu0 0.0
    %1099 = vmatprep.subr.mxu0 0.0
    %1100 = vmatpush1.msra.mxu0 0.0
    %1101 = vmatprep.subr.mxu0 0.0
    %1102 = vmatpush1.msra.mxu0 0.0
    %1103 = vmatprep.subr.mxu0 0.0
    %1104 = vmatpush1.msra.mxu0 0.0
    %1105 = vmatprep.subr.mxu0 0.0
    %1106 = vmatpush1.msra.mxu0 0.0
    %1107 = vmatprep.subr.mxu0 0.0
    %1108 = vmatpush1.msra.mxu0 0.0
    %1109 = vmatprep.subr.mxu0 0.0
    %1110 = vmatpush1.msra.mxu0 0.0
    %1111 = vmatprep.subr.mxu0 0.0
    %1112 = vmatpush1.msra.mxu0 0.0
    %1113 = vmatprep.subr.mxu0 0.0
    %1114 = vmatpush1.msra.mxu0 0.0
    %1115 = vmatprep.subr.mxu0 0.0
    %1116 = vmatpush1.msra.mxu0 0.0
    %1117 = vmatprep.subr.mxu0 0.0
    %1118 = vmatpush1.msra.mxu0 0.0
    %1119 = vmatprep.subr.mxu0 0.0
    %1120 = vmatpush1.msra.mxu0 0.0
    %1121 = vmatprep.subr.mxu0 0.0
    %1122 = vmatpush1.msra.mxu0 0.0
    %1123 = vmatprep.subr.mxu0 0.0
    %1124 = vmatpush1.msra.mxu0 0.0
    %1125 = vmatprep.subr.mxu0 0.0
    %1126 = vmatpush1.msra.mxu0 0.0
    %1127 = vmatprep.subr.mxu0 0.0
    %1128 = vmatpush1.msra.mxu0 0.0
    %1129 = vmatprep.subr.mxu0 0.0
    %1130 = vmatpush1.msra.mxu0 0.0
    %1131 = vmatprep.subr.mxu0 0.0
    %1132 = vmatpush1.msra.mxu0 0.0
    %1133 = vmatprep.subr.mxu0 0.0
    %1134 = vmatpush1.msra.mxu0 0.0
    %1135 = vmatprep.subr.mxu0 0.0
    %1136 = vmatpush1.msra.mxu0 0.0
    %1137 = vmatprep.subr.mxu0 0.0
    %1138 = vmatpush1.msra.mxu0 0.0
    %1139 = vmatprep.subr.mxu0 0.0
    %1140 = vmatpush1.msra.mxu0 0.0
    %1141 = vmatprep.mubr.f32.mxu0 0.0
    %1142 = vmatmul.mubr.f32.gmra.mrb[0].mxu0 %v1075
    %v1143 = vpop.f32.mrb[0].mxu0
    %v1144 = vadd.f32 0.0, %v1143
    %v1145 = vpop.f32.mrb[0].mxu0
    %1146 = vdwg.mxu0
    %1147 = vrot.lane.b32.xlu0 %v105, 64
    %v1148 = vpop.permute.xlu0 %1147
    %v1151 = vsel %vm124, %v839, 0
    %1153 = vmatprep.subr.mxu0 0.0
    %1154 = vmatpush1.msra.mxu0 %v1148
    %1155 = vmatprep.subr.mxu0 0.0
    %1156 = vmatpush1.msra.mxu0 0.0
    %1157 = vmatprep.subr.mxu0 0.0
    %1158 = vmatpush1.msra.mxu0 0.0
    %1159 = vmatprep.subr.mxu0 0.0
    %1160 = vmatpush1.msra.mxu0 0.0
    %1161 = vmatprep.subr.mxu0 0.0
    %1162 = vmatpush1.msra.mxu0 0.0
    %1163 = vmatprep.subr.mxu0 0.0
    %1164 = vmatpush1.msra.mxu0 0.0
    %1165 = vmatprep.subr.mxu0 0.0
    %1166 = vmatpush1.msra.mxu0 0.0
    %1167 = vmatprep.subr.mxu0 0.0
    %1168 = vmatpush1.msra.mxu0 0.0
    %1169 = vmatprep.subr.mxu0 0.0
    %1170 = vmatpush1.msra.mxu0 0.0
    %1171 = vmatprep.subr.mxu0 0.0
    %1172 = vmatpush1.msra.mxu0 0.0
    %1173 = vmatprep.subr.mxu0 0.0
    %1174 = vmatpush1.msra.mxu0 0.0
    %1175 = vmatprep.subr.mxu0 0.0
    %1176 = vmatpush1.msra.mxu0 0.0
    %1177 = vmatprep.subr.mxu0 0.0
    %1178 = vmatpush1.msra.mxu0 0.0
    %1179 = vmatprep.subr.mxu0 0.0
    %1180 = vmatpush1.msra.mxu0 0.0
    %1181 = vmatprep.subr.mxu0 0.0
    %1182 = vmatpush1.msra.mxu0 0.0
    %1183 = vmatprep.subr.mxu0 0.0
    %1184 = vmatpush1.msra.mxu0 0.0
    %1185 = vmatprep.subr.mxu0 0.0
    %1186 = vmatpush1.msra.mxu0 0.0
    %1187 = vmatprep.subr.mxu0 0.0
    %1188 = vmatpush1.msra.mxu0 0.0
    %1189 = vmatprep.subr.mxu0 0.0
    %1190 = vmatpush1.msra.mxu0 0.0
    %1191 = vmatprep.subr.mxu0 0.0
    %1192 = vmatpush1.msra.mxu0 0.0
    %1193 = vmatprep.subr.mxu0 0.0
    %1194 = vmatpush1.msra.mxu0 0.0
    %1195 = vmatprep.subr.mxu0 0.0
    %1196 = vmatpush1.msra.mxu0 0.0
    %1197 = vmatprep.subr.mxu0 0.0
    %1198 = vmatpush1.msra.mxu0 0.0
    %1199 = vmatprep.subr.mxu0 0.0
    %1200 = vmatpush1.msra.mxu0 0.0
    %1201 = vmatprep.subr.mxu0 0.0
    %1202 = vmatpush1.msra.mxu0 0.0
    %1203 = vmatprep.subr.mxu0 0.0
    %1204 = vmatpush1.msra.mxu0 0.0
    %1205 = vmatprep.subr.mxu0 0.0
    %1206 = vmatpush1.msra.mxu0 0.0
    %1207 = vmatprep.subr.mxu0 0.0
    %1208 = vmatpush1.msra.mxu0 0.0
    %1209 = vmatprep.subr.mxu0 0.0
    %1210 = vmatpush1.msra.mxu0 0.0
    %1211 = vmatprep.subr.mxu0 0.0
    %1212 = vmatpush1.msra.mxu0 0.0
    %1213 = vmatprep.subr.mxu0 0.0
    %1214 = vmatpush1.msra.mxu0 0.0
    %1215 = vmatprep.subr.mxu0 0.0
    %1216 = vmatpush1.msra.mxu0 0.0
    %1217 = vmatprep.mubr.f32.mxu0 0.0
    %1218 = vmatmul.mubr.f32.gmra.mrb[0].mxu0 %v1151
    %v1219 = vpop.f32.mrb[0].mxu0
    %v1220 = vadd.f32 0.0, %v1219
    %v1221 = vpop.f32.mrb[0].mxu0
    %1222 = vdwg.mxu0
    %1223 = vrot.lane.b32.xlu0 %v117, 64
    %v1224 = vpop.permute.xlu0 %1223
    %v1227 = vsel %vm124, %v840, 0
    %1229 = vmatprep.subr.mxu0 0.0
    %1230 = vmatpush1.msra.mxu0 %v1224
    %1231 = vmatprep.subr.mxu0 0.0
    %1232 = vmatpush1.msra.mxu0 0.0
    %1233 = vmatprep.subr.mxu0 0.0
    %1234 = vmatpush1.msra.mxu0 0.0
    %1235 = vmatprep.subr.mxu0 0.0
    %1236 = vmatpush1.msra.mxu0 0.0
    %1237 = vmatprep.subr.mxu0 0.0
    %1238 = vmatpush1.msra.mxu0 0.0
    %1239 = vmatprep.subr.mxu0 0.0
    %1240 = vmatpush1.msra.mxu0 0.0
    %1241 = vmatprep.subr.mxu0 0.0
    %1242 = vmatpush1.msra.mxu0 0.0
    %1243 = vmatprep.subr.mxu0 0.0
    %1244 = vmatpush1.msra.mxu0 0.0
    %1245 = vmatprep.subr.mxu0 0.0
    %1246 = vmatpush1.msra.mxu0 0.0
    %1247 = vmatprep.subr.mxu0 0.0
    %1248 = vmatpush1.msra.mxu0 0.0
    %1249 = vmatprep.subr.mxu0 0.0
    %1250 = vmatpush1.msra.mxu0 0.0
    %1251 = vmatprep.subr.mxu0 0.0
    %1252 = vmatpush1.msra.mxu0 0.0
    %1253 = vmatprep.subr.mxu0 0.0
    %1254 = vmatpush1.msra.mxu0 0.0
    %1255 = vmatprep.subr.mxu0 0.0
    %1256 = vmatpush1.msra.mxu0 0.0
    %1257 = vmatprep.subr.mxu0 0.0
    %1258 = vmatpush1.msra.mxu0 0.0
    %1259 = vmatprep.subr.mxu0 0.0
    %1260 = vmatpush1.msra.mxu0 0.0
    %1261 = vmatprep.subr.mxu0 0.0
    %1262 = vmatpush1.msra.mxu0 0.0
    %1263 = vmatprep.subr.mxu0 0.0
    %1264 = vmatpush1.msra.mxu0 0.0
    %1265 = vmatprep.subr.mxu0 0.0
    %1266 = vmatpush1.msra.mxu0 0.0
    %1267 = vmatprep.subr.mxu0 0.0
    %1268 = vmatpush1.msra.mxu0 0.0
    %1269 = vmatprep.subr.mxu0 0.0
    %1270 = vmatpush1.msra.mxu0 0.0
    %1271 = vmatprep.subr.mxu0 0.0
    %1272 = vmatpush1.msra.mxu0 0.0
    %1273 = vmatprep.subr.mxu0 0.0
    %1274 = vmatpush1.msra.mxu0 0.0
    %1275 = vmatprep.subr.mxu0 0.0
    %1276 = vmatpush1.msra.mxu0 0.0
    %1277 = vmatprep.subr.mxu0 0.0
    %1278 = vmatpush1.msra.mxu0 0.0
    %1279 = vmatprep.subr.mxu0 0.0
    %1280 = vmatpush1.msra.mxu0 0.0
    %1281 = vmatprep.subr.mxu0 0.0
    %1282 = vmatpush1.msra.mxu0 0.0
    %1283 = vmatprep.subr.mxu0 0.0
    %1284 = vmatpush1.msra.mxu0 0.0
    %1285 = vmatprep.subr.mxu0 0.0
    %1286 = vmatpush1.msra.mxu0 0.0
    %1287 = vmatprep.subr.mxu0 0.0
    %1288 = vmatpush1.msra.mxu0 0.0
    %1289 = vmatprep.subr.mxu0 0.0
    %1290 = vmatpush1.msra.mxu0 0.0
    %1291 = vmatprep.subr.mxu0 0.0
    %1292 = vmatpush1.msra.mxu0 0.0
    %1293 = vmatprep.mubr.f32.mxu0 0.0
    %1294 = vmatmul.mubr.f32.gmra.mrb[0].mxu0 %v1227
    %v1295 = vpop.f32.mrb[0].mxu0
    %v1296 = vadd.f32 0.0, %v1295
    %v1297 = vpop.f32.mrb[0].mxu0
    %1298 = vdwg.mxu0
    %1299 = vrot.lane.b32.xlu0 %v119, 64
    %v1300 = vpop.permute.xlu0 %1299
    %v1303 = vsel %vm124, %v841, 0
    %1305 = vmatprep.subr.mxu0 0.0
    %1306 = vmatpush1.msra.mxu0 %v1300
    %1307 = vmatprep.subr.mxu0 0.0
    %1308 = vmatpush1.msra.mxu0 0.0
    %1309 = vmatprep.subr.mxu0 0.0
    %1310 = vmatpush1.msra.mxu0 0.0
    %1311 = vmatprep.subr.mxu0 0.0
    %1312 = vmatpush1.msra.mxu0 0.0
    %1313 = vmatprep.subr.mxu0 0.0
    %1314 = vmatpush1.msra.mxu0 0.0
    %1315 = vmatprep.subr.mxu0 0.0
    %1316 = vmatpush1.msra.mxu0 0.0
    %1317 = vmatprep.subr.mxu0 0.0
    %1318 = vmatpush1.msra.mxu0 0.0
    %1319 = vmatprep.subr.mxu0 0.0
    %1320 = vmatpush1.msra.mxu0 0.0
    %1321 = vmatprep.subr.mxu0 0.0
    %1322 = vmatpush1.msra.mxu0 0.0
    %1323 = vmatprep.subr.mxu0 0.0
    %1324 = vmatpush1.msra.mxu0 0.0
    %1325 = vmatprep.subr.mxu0 0.0
    %1326 = vmatpush1.msra.mxu0 0.0
    %1327 = vmatprep.subr.mxu0 0.0
    %1328 = vmatpush1.msra.mxu0 0.0
    %1329 = vmatprep.subr.mxu0 0.0
    %1330 = vmatpush1.msra.mxu0 0.0
    %1331 = vmatprep.subr.mxu0 0.0
    %1332 = vmatpush1.msra.mxu0 0.0
    %1333 = vmatprep.subr.mxu0 0.0
    %1334 = vmatpush1.msra.mxu0 0.0
    %1335 = vmatprep.subr.mxu0 0.0
    %1336 = vmatpush1.msra.mxu0 0.0
    %1337 = vmatprep.subr.mxu0 0.0
    %1338 = vmatpush1.msra.mxu0 0.0
    %1339 = vmatprep.subr.mxu0 0.0
    %1340 = vmatpush1.msra.mxu0 0.0
    %1341 = vmatprep.subr.mxu0 0.0
    %1342 = vmatpush1.msra.mxu0 0.0
    %1343 = vmatprep.subr.mxu0 0.0
    %1344 = vmatpush1.msra.mxu0 0.0
    %1345 = vmatprep.subr.mxu0 0.0
    %1346 = vmatpush1.msra.mxu0 0.0
    %1347 = vmatprep.subr.mxu0 0.0
    %1348 = vmatpush1.msra.mxu0 0.0
    %1349 = vmatprep.subr.mxu0 0.0
    %1350 = vmatpush1.msra.mxu0 0.0
    %1351 = vmatprep.subr.mxu0 0.0
    %1352 = vmatpush1.msra.mxu0 0.0
    %1353 = vmatprep.subr.mxu0 0.0
    %1354 = vmatpush1.msra.mxu0 0.0
    %1355 = vmatprep.subr.mxu0 0.0
    %1356 = vmatpush1.msra.mxu0 0.0
    %1357 = vmatprep.subr.mxu0 0.0
    %1358 = vmatpush1.msra.mxu0 0.0
    %1359 = vmatprep.subr.mxu0 0.0
    %1360 = vmatpush1.msra.mxu0 0.0
    %1361 = vmatprep.subr.mxu0 0.0
    %1362 = vmatpush1.msra.mxu0 0.0
    %1363 = vmatprep.subr.mxu0 0.0
    %1364 = vmatpush1.msra.mxu0 0.0
    %1365 = vmatprep.subr.mxu0 0.0
    %1366 = vmatpush1.msra.mxu0 0.0
    %1367 = vmatprep.subr.mxu0 0.0
    %1368 = vmatpush1.msra.mxu0 0.0
    %1369 = vmatprep.mubr.f32.mxu0 0.0
    %1370 = vmatmul.mubr.f32.gmra.mrb[0].mxu0 %v1303
    %v1371 = vpop.f32.mrb[0].mxu0
    %v1372 = vadd.f32 0.0, %v1371
    %v1373 = vpop.f32.mrb[0].mxu0
    %1374 = vdwg.mxu0
    %1375 = vrot.lane.b32.xlu0 %v121, 64
    %v1376 = vpop.permute.xlu0 %1375
    %v1379 = vsel %vm124, %v842, 0
    %1381 = vmatprep.subr.mxu0 0.0
    %1382 = vmatpush1.msra.mxu0 %v1376
    %1383 = vmatprep.subr.mxu0 0.0
    %1384 = vmatpush1.msra.mxu0 0.0
    %1385 = vmatprep.subr.mxu0 0.0
    %1386 = vmatpush1.msra.mxu0 0.0
    %1387 = vmatprep.subr.mxu0 0.0
    %1388 = vmatpush1.msra.mxu0 0.0
    %1389 = vmatprep.subr.mxu0 0.0
    %1390 = vmatpush1.msra.mxu0 0.0
    %1391 = vmatprep.subr.mxu0 0.0
    %1392 = vmatpush1.msra.mxu0 0.0
    %1393 = vmatprep.subr.mxu0 0.0
    %1394 = vmatpush1.msra.mxu0 0.0
    %1395 = vmatprep.subr.mxu0 0.0
    %1396 = vmatpush1.msra.mxu0 0.0
    %1397 = vmatprep.subr.mxu0 0.0
    %1398 = vmatpush1.msra.mxu0 0.0
    %1399 = vmatprep.subr.mxu0 0.0
    %1400 = vmatpush1.msra.mxu0 0.0
    %1401 = vmatprep.subr.mxu0 0.0
    %1402 = vmatpush1.msra.mxu0 0.0
    %1403 = vmatprep.subr.mxu0 0.0
    %1404 = vmatpush1.msra.mxu0 0.0
    %1405 = vmatprep.subr.mxu0 0.0
    %1406 = vmatpush1.msra.mxu0 0.0
    %1407 = vmatprep.subr.mxu0 0.0
    %1408 = vmatpush1.msra.mxu0 0.0
    %1409 = vmatprep.subr.mxu0 0.0
    %1410 = vmatpush1.msra.mxu0 0.0
    %1411 = vmatprep.subr.mxu0 0.0
    %1412 = vmatpush1.msra.mxu0 0.0
    %1413 = vmatprep.subr.mxu0 0.0
    %1414 = vmatpush1.msra.mxu0 0.0
    %1415 = vmatprep.subr.mxu0 0.0
    %1416 = vmatpush1.msra.mxu0 0.0
    %1417 = vmatprep.subr.mxu0 0.0
    %1418 = vmatpush1.msra.mxu0 0.0
    %1419 = vmatprep.subr.mxu0 0.0
    %1420 = vmatpush1.msra.mxu0 0.0
    %1421 = vmatprep.subr.mxu0 0.0
    %1422 = vmatpush1.msra.mxu0 0.0
    %1423 = vmatprep.subr.mxu0 0.0
    %1424 = vmatpush1.msra.mxu0 0.0
    %1425 = vmatprep.subr.mxu0 0.0
    %1426 = vmatpush1.msra.mxu0 0.0
    %1427 = vmatprep.subr.mxu0 0.0
    %1428 = vmatpush1.msra.mxu0 0.0
    %1429 = vmatprep.subr.mxu0 0.0
    %1430 = vmatpush1.msra.mxu0 0.0
    %1431 = vmatprep.subr.mxu0 0.0
    %1432 = vmatpush1.msra.mxu0 0.0
    %1433 = vmatprep.subr.mxu0 0.0
    %1434 = vmatpush1.msra.mxu0 0.0
    %1435 = vmatprep.subr.mxu0 0.0
    %1436 = vmatpush1.msra.mxu0 0.0
    %1437 = vmatprep.subr.mxu0 0.0
    %1438 = vmatpush1.msra.mxu0 0.0
    %1439 = vmatprep.subr.mxu0 0.0
    %1440 = vmatpush1.msra.mxu0 0.0
    %1441 = vmatprep.subr.mxu0 0.0
    %1442 = vmatpush1.msra.mxu0 0.0
    %1443 = vmatprep.subr.mxu0 0.0
    %1444 = vmatpush1.msra.mxu0 0.0
    %1445 = vmatprep.mubr.f32.mxu0 0.0
    %1446 = vmatmul.mubr.f32.gmra.mrb[0].mxu0 %v1379
    %v1447 = vpop.f32.mrb[0].mxu0
    %v1448 = vadd.f32 0.0, %v1447
    %v1449 = vpop.f32.mrb[0].mxu0
    %1450 = vdwg.mxu0
    %1452 = vrot.lane.b32.xlu0 %v992, 8
    %v1453 = vpop.permute.xlu0 %1452
    %1456 = vrot.lane.b32.xlu0 %v1068, 16
    %v1457 = vpop.permute.xlu0 %1456
    %1460 = vrot.lane.b32.xlu0 %v1144, 24
    %v1461 = vpop.permute.xlu0 %1460
    %v1463 = vsel %vm124, %v916, %v1453
    %vm1464 = vcmask 130048
    %v1465 = vsel %vm1464, %v1463, %v1457
    %vm1466 = vcmask 195584
    %v1467 = vsel %vm1466, %v1465, %v1461
    %1469 = vrot.lane.b32.xlu0 %v1296, 8
    %v1470 = vpop.permute.xlu0 %1469
    %1473 = vrot.lane.b32.xlu0 %v1372, 16
    %v1474 = vpop.permute.xlu0 %1473
    %1477 = vrot.lane.b32.xlu0 %v1448, 24
    %v1478 = vpop.permute.xlu0 %1477
    %v1480 = vsel %vm124, %v1220, %v1470
    %v1481 = vsel %vm1464, %v1480, %v1474
    %v1482 = vsel %vm1466, %v1481, %v1478
    %v1483 = vld [vmem:[%s2] sm:$0xff]
    %v1484 = vld [vmem:[%s2 + $0x8] sm:$0xff]
    %v1485 = vld [vmem:[%s2 + $0x10] sm:$0xff]
    %v1486 = vld [vmem:[%s2 + $0x18] sm:$0xff]
    %v1487 = vld [vmem:[%s2 + $0x20] sm:$0x1]
    %v1488 = vlaneseq
    %v1489 = vshrl.u32 %v1488, 7
    %v1490 = vsub.s32 0, %v1489
    %v1491 = vrot.slane %v1487, %v1490
    %v1493 = vsel %vm26, %v1467, 0
    %v1496 = vsel %vm26, %v1482, 0
    %1498 = vmatprep.subr.mxu0 0.0
    %1499 = vmatpush1.msra.mxu0 %v1483
    %1500 = vmatprep.subr.mxu0 0.0
    %1501 = vmatpush1.msra.mxu0 %v1484
    %1502 = vmatprep.subr.mxu0 0.0
    %1503 = vmatpush1.msra.mxu0 %v1485
    %1504 = vmatprep.subr.mxu0 0.0
    %1505 = vmatpush1.msra.mxu0 %v1486
    %1506 = vmatprep.subr.mxu0 0.0
    %1507 = vmatpush1.msra.mxu0 0.0
    %1508 = vmatprep.subr.mxu0 0.0
    %1509 = vmatpush1.msra.mxu0 0.0
    %1510 = vmatprep.subr.mxu0 0.0
    %1511 = vmatpush1.msra.mxu0 0.0
    %1512 = vmatprep.subr.mxu0 0.0
    %1513 = vmatpush1.msra.mxu0 0.0
    %1514 = vmatprep.subr.mxu0 0.0
    %1515 = vmatpush1.msra.mxu0 0.0
    %1516 = vmatprep.subr.mxu0 0.0
    %1517 = vmatpush1.msra.mxu0 0.0
    %1518 = vmatprep.subr.mxu0 0.0
    %1519 = vmatpush1.msra.mxu0 0.0
    %1520 = vmatprep.subr.mxu0 0.0
    %1521 = vmatpush1.msra.mxu0 0.0
    %1522 = vmatprep.subr.mxu0 0.0
    %1523 = vmatpush1.msra.mxu0 0.0
    %1524 = vmatprep.subr.mxu0 0.0
    %1525 = vmatpush1.msra.mxu0 0.0
    %1526 = vmatprep.subr.mxu0 0.0
    %1527 = vmatpush1.msra.mxu0 0.0
    %1528 = vmatprep.subr.mxu0 0.0
    %1529 = vmatpush1.msra.mxu0 0.0
    %1530 = vmatprep.subr.mxu0 0.0
    %1531 = vmatpush1.msra.mxu0 0.0
    %1532 = vmatprep.subr.mxu0 0.0
    %1533 = vmatpush1.msra.mxu0 0.0
    %1534 = vmatprep.subr.mxu0 0.0
    %1535 = vmatpush1.msra.mxu0 0.0
    %1536 = vmatprep.subr.mxu0 0.0
    %1537 = vmatpush1.msra.mxu0 0.0
    %1538 = vmatprep.subr.mxu0 0.0
    %1539 = vmatpush1.msra.mxu0 0.0
    %1540 = vmatprep.subr.mxu0 0.0
    %1541 = vmatpush1.msra.mxu0 0.0
    %1542 = vmatprep.subr.mxu0 0.0
    %1543 = vmatpush1.msra.mxu0 0.0
    %1544 = vmatprep.subr.mxu0 0.0
    %1545 = vmatpush1.msra.mxu0 0.0
    %1546 = vmatprep.subr.mxu0 0.0
    %1547 = vmatpush1.msra.mxu0 0.0
    %1548 = vmatprep.subr.mxu0 0.0
    %1549 = vmatpush1.msra.mxu0 0.0
    %1550 = vmatprep.subr.mxu0 0.0
    %1551 = vmatpush1.msra.mxu0 0.0
    %1552 = vmatprep.subr.mxu0 0.0
    %1553 = vmatpush1.msra.mxu0 0.0
    %1554 = vmatprep.subr.mxu0 0.0
    %1555 = vmatpush1.msra.mxu0 0.0
    %1556 = vmatprep.subr.mxu0 0.0
    %1557 = vmatpush1.msra.mxu0 0.0
    %1558 = vmatprep.subr.mxu0 0.0
    %1559 = vmatpush1.msra.mxu0 0.0
    %1560 = vmatprep.subr.mxu0 0.0
    %1561 = vmatpush1.msra.mxu0 0.0
    %1562 = vmatprep.mubr.f32.mxu0 0.0
    %1563 = vmatmul.mubr.f32.gmra.mrb[0].mxu0 %v1493
    %v1564 = vpop.f32.mrb[0].mxu0
    %v1565 = vadd.f32 %v1491, %v1564
    %v1566 = vpop.f32.mrb[0].mxu0
    %1567 = vmatprep.mubr.f32.mxu0 0.0
    %1568 = vmatmul.mubr.f32.gmra.mrb[0].mxu0 %v1496
    %v1569 = vpop.f32.mrb[0].mxu0
    %v1570 = vadd.f32 %v1491, %v1569
    %v1571 = vpop.f32.mrb[0].mxu0
    %1572 = vdwg.mxu0
    %1573 = vst.msk [vmem:[#allocation2] sm:$0xff] %vm26, %v1565
    %1574 = vst.msk [vmem:[#allocation2 + $0x8] sm:$0xff] %vm26, %v1570
    // Predicated region
    $region14: #{self_attention.1} parent=1 // pred_check
      _
    $region15: #{self_attention.1} parent=1 // pred_check_branch
      %1576 = sbr.rel (0) target = $region17
    $region16: #{self_attention.1} parent=1 // pred_region
      %s1578 = ssub.s32 256, 256
      %1579 = vsyncadd [#allocation3], %s1578
      %s1580 = sshll.u32 [#allocation2], 4
      %s1581 = int_to_ptr.vmem [resolvable:$true] %s1580
      %1586 = dma.vmem_to_hbm [thread:$0]  %s1581, 256, %s3, [#allocation3], 128, 128, 8
    $region17: #{self_attention.1} parent=1 // pred_fallthru
      _
    // Predicated region
    $region18: #{self_attention.1} parent=1 // pred_check
      _
    $region19: #{self_attention.1} parent=1 // pred_check_branch
      %1588 = sbr.rel (0) target = $region21
    $region20: #{self_attention.1} parent=1 // pred_region
      %1589 = dma.done [#allocation3], 256
    $region21: #{self_attention.1} parent=1 // pred_fallthru
      _
    %1590 = vsyncpa [#allocation3], 1

</llo_original>
